<compile_context>
chip_gen: v7x
topology: tpu7x:2x2x1
jax: 0.10.0
libtpu: 0.0.40
codegen_flags: <defaults>
</compile_context>

<pallas_src>
import functools

import jax
import jax.numpy as jnp
from jax.experimental import pallas as pl
from jax.experimental.pallas import tpu as pltpu


# ----------------------------------------------------------------------------
# Fused kernel: LayerNorm(xq), LayerNorm(xm), multi-head cross-attention.
# Grid = (B,); one batch element per grid step, all heads handled in-body.
# ----------------------------------------------------------------------------
def _prenorm2_cross_attn_kernel(xq_ref, xm_ref, g_ref, b_ref,
                                wq_ref, wk_ref, wv_ref, wo_ref, bo_ref,
                                o_ref, *, heads, dim_head, eps, scale,
                                mxu_dtype):
    gamma = g_ref[...]                                        # (1, D)
    beta = b_ref[...]                                         # (1, D)

    def layernorm(x):                                         # (rows, D) f32
        x = x.astype(jnp.float32)
        mu = jnp.mean(x, axis=-1, keepdims=True)
        xc = x - mu
        var = jnp.mean(xc * xc, axis=-1, keepdims=True)       # biased (torch)
        inv = jax.lax.rsqrt(var + eps)
        return xc * inv * gamma + beta

    xq_n = layernorm(xq_ref[0])                               # (N, D)
    xm_n = layernorm(xm_ref[0])                               # (M, D)

    xq_c = xq_n.astype(mxu_dtype)
    xm_c = xm_n.astype(mxu_dtype)

    # One big matmul per projection (all heads at once).
    q_all = jnp.dot(xq_c, wq_ref[...].astype(mxu_dtype),
                    preferred_element_type=jnp.float32) * scale   # (N, H*dh)
    k_all = jnp.dot(xm_c, wk_ref[...].astype(mxu_dtype),
                    preferred_element_type=jnp.float32)           # (M, H*dh)
    v_all = jnp.dot(xm_c, wv_ref[...].astype(mxu_dtype),
                    preferred_element_type=jnp.float32)           # (M, H*dh)

    # Per-head attention on resident VMEM tiles; static unroll (heads small).
    ctx_parts = []
    for h in range(heads):
        sl = slice(h * dim_head, (h + 1) * dim_head)
        q_h = q_all[:, sl]                                    # (N, dh)
        k_h = k_all[:, sl]                                    # (M, dh)
        v_h = v_all[:, sl]                                    # (M, dh)
        # scores (N, M): contract over dim_head without explicit transpose.
        s = jax.lax.dot_general(q_h, k_h, (((1,), (1,)), ((), ())),
                                preferred_element_type=jnp.float32)
        s = s - jnp.max(s, axis=-1, keepdims=True)
        p = jnp.exp(s)
        denom = jnp.sum(p, axis=-1, keepdims=True)
        p = p * pl.reciprocal(denom, approx=True)             # EUP slot
        ctx_parts.append(jnp.dot(p.astype(mxu_dtype), v_h.astype(mxu_dtype),
                                 preferred_element_type=jnp.float32))
    ctx_all = jnp.concatenate(ctx_parts, axis=-1)             # (N, H*dh)

    # Single output projection over all heads + bias.
    out = jnp.dot(ctx_all.astype(mxu_dtype), wo_ref[...].astype(mxu_dtype),
                  preferred_element_type=jnp.float32) + bo_ref[...]
    o_ref[0] = out.astype(o_ref.dtype)


def pre_norm2_cross_attention(x, x2, gamma, beta, params, *, eps=1e-5,
                              mxu_dtype=jnp.float32):
    """PreNorm2 with fn = Cross_Attention, fused into one Pallas kernel.

    x:  (B, N, D) queries, x2: (B, M, D) keys/values -> (B, N, D).
    On v6e / v7x pass mxu_dtype=jnp.bfloat16 for ~2x MXU throughput
    (accumulation stays f32); demo keeps f32 for an exact reference check.
    """
    B, N, D = x.shape
    _, M, _ = x2.shape
    wq, wk, wv, wo, bo = (params["wq"], params["wk"], params["wv"],
                          params["wo"], params["bo"])
    heads, _, dim_head = wq.shape
    hd = heads * dim_head
    scale = dim_head ** -0.5

    # Pack per-head weights into single fused projection matrices.
    wq_f = jnp.transpose(wq, (1, 0, 2)).reshape(D, hd)        # (D, H*dh)
    wk_f = jnp.transpose(wk, (1, 0, 2)).reshape(D, hd)
    wv_f = jnp.transpose(wv, (1, 0, 2)).reshape(D, hd)
    wo_f = wo.reshape(hd, D)                                  # (H*dh, D)

    kernel = functools.partial(
        _prenorm2_cross_attn_kernel, heads=heads, dim_head=dim_head,
        eps=eps, scale=scale, mxu_dtype=mxu_dtype)

    return pl.pallas_call(
        kernel,
        out_shape=jax.ShapeDtypeStruct((B, N, D), x.dtype),
        grid_spec=pltpu.PrefetchScalarGridSpec(
            num_scalar_prefetch=0,
            grid=(B,),
            in_specs=[
                pl.BlockSpec((1, N, D), lambda b: (b, 0, 0)),     # x (queries)
                pl.BlockSpec((1, M, D), lambda b: (b, 0, 0)),     # x2 (kv)
                pl.BlockSpec((1, D), lambda b: (0, 0)),           # gamma
                pl.BlockSpec((1, D), lambda b: (0, 0)),           # beta
                pl.BlockSpec((D, hd), lambda b: (0, 0)),          # Wq (fused)
                pl.BlockSpec((D, hd), lambda b: (0, 0)),          # Wk (fused)
                pl.BlockSpec((D, hd), lambda b: (0, 0)),          # Wv (fused)
                pl.BlockSpec((hd, D), lambda b: (0, 0)),          # Wo (fused)
                pl.BlockSpec((1, D), lambda b: (0, 0)),           # bo
            ],
            out_specs=pl.BlockSpec((1, N, D), lambda b: (b, 0, 0)),
        ),
        compiler_params=pltpu.CompilerParams(
            dimension_semantics=("parallel",)),
    )(x, x2, gamma.reshape(1, D), beta.reshape(1, D),
      wq_f, wk_f, wv_f, wo_f, bo.reshape(1, D))


# ----------------------------------------------------------------------------
# Standalone LayerNorm kernel (only for the generic-fn PreNorm2 path).
# Large row tiles, padded grid (no divisibility assert).
# ----------------------------------------------------------------------------
def _layernorm_kernel(x_ref, g_ref, b_ref, o_ref, *, eps):
    x = x_ref[...].astype(jnp.float32)                        # (tile_rows, D)
    mu = jnp.mean(x, axis=-1, keepdims=True)
    xc = x - mu
    var = jnp.mean(xc * xc, axis=-1, keepdims=True)
    inv = jax.lax.rsqrt(var + eps)
    o_ref[...] = (xc * inv * g_ref[...] + b_ref[...]).astype(o_ref.dtype)


def layer_norm(x, gamma, beta, *, eps=1e-5, tile_rows=256):
    """x: (B, N, D) -> (B, N, D); normalizes over D with affine gamma/beta."""
    B, N, D = x.shape
    rows = B * N
    x2d = x.reshape(rows, D)
    # Big, sublane-aligned row tiles; pad rows instead of asserting.
    tile_rows = max(8, (min(tile_rows, ((rows + 7) // 8) * 8) // 8) * 8)
    padded = pl.cdiv(rows, tile_rows) * tile_rows
    if padded != rows:
        x2d = jnp.pad(x2d, ((0, padded - rows), (0, 0)))
    out = pl.pallas_call(
        functools.partial(_layernorm_kernel, eps=eps),
        out_shape=jax.ShapeDtypeStruct((padded, D), x.dtype),
        grid_spec=pltpu.PrefetchScalarGridSpec(
            num_scalar_prefetch=0,
            grid=(padded // tile_rows,),
            in_specs=[
                pl.BlockSpec((tile_rows, D), lambda i: (i, 0)),
                pl.BlockSpec((1, D), lambda i: (0, 0)),
                pl.BlockSpec((1, D), lambda i: (0, 0)),
            ],
            out_specs=pl.BlockSpec((tile_rows, D), lambda i: (i, 0)),
        ),
        compiler_params=pltpu.CompilerParams(
            dimension_semantics=("parallel",)),
    )(x2d, gamma.reshape(1, D), beta.reshape(1, D))
    return out[:rows].reshape(B, N, D)


def pre_norm2(x, x2, gamma, beta, fn, **kwargs):
    """Generic PreNorm2: fn(norm(x), norm(x2)) for an arbitrary fn."""
    return fn(layer_norm(x, gamma, beta), layer_norm(x2, gamma, beta), **kwargs)


# ----------------------------------------------------------------------------
# Pure-JAX reference (sanity check)
# ----------------------------------------------------------------------------
def _ref_layernorm(x, g, b, eps=1e-5):
    mu = jnp.mean(x, axis=-1, keepdims=True)
    var = jnp.mean((x - mu) ** 2, axis=-1, keepdims=True)
    return (x - mu) / jnp.sqrt(var + eps) * g + b


def _ref_cross_attention(xq, xm, params):
    wq, wk, wv, wo, bo = (params["wq"], params["wk"], params["wv"],
                          params["wo"], params["bo"])
    heads, _, dim_head = wq.shape
    scale = dim_head ** -0.5
    q = jnp.einsum("bnd,hde->bhne", xq, wq) * scale
    k = jnp.einsum("bmd,hde->bhme", xm, wk)
    v = jnp.einsum("bmd,hde->bhme", xm, wv)
    s = jnp.einsum("bhne,bhme->bhnm", q, k)
    p = jax.nn.softmax(s, axis=-1)
    ctx = jnp.einsum("bhnm,bhme->bhne", p, v)
    return jnp.einsum("bhne,hed->bnd", ctx, wo) + bo


if __name__ == "__main__":
    B, N, M, D = 2, 8, 8, 32
    heads, dim_head = 2, 16

    key = jax.random.PRNGKey(0)
    kx, kx2, kg, kb, kq, kk, kv, ko, kbo = jax.random.split(key, 9)

    x = jax.random.normal(kx, (B, N, D), dtype=jnp.float32)
    x2 = jax.random.normal(kx2, (B, M, D), dtype=jnp.float32)

    # nn.LayerNorm(dim) affine params: weight (D,), bias (D,).
    gamma = 1.0 + 0.1 * jax.random.normal(kg, (D,), dtype=jnp.float32)
    beta = 0.1 * jax.random.normal(kb, (D,), dtype=jnp.float32)

    # Cross-attention (fn) parameters, per-head weight layout.
    attn_params = {
        "wq": 0.1 * jax.random.normal(kq, (heads, D, dim_head), dtype=jnp.float32),
        "wk": 0.1 * jax.random.normal(kk, (heads, D, dim_head), dtype=jnp.float32),
        "wv": 0.1 * jax.random.normal(kv, (heads, D, dim_head), dtype=jnp.float32),
        "wo": 0.1 * jax.random.normal(ko, (heads, dim_head, D), dtype=jnp.float32),
        "bo": 0.1 * jax.random.normal(kbo, (1, D), dtype=jnp.float32),
    }

    # Fused PreNorm2 + cross-attention (single pallas_call).
    out = pre_norm2_cross_attention(x, x2, gamma, beta, attn_params)
    out = jax.block_until_ready(out)

    ref = _ref_cross_attention(_ref_layernorm(x, gamma, beta),
                               _ref_layernorm(x2, gamma, beta), attn_params)
    assert out.shape == (B, N, D)
    assert jnp.allclose(out, ref, atol=1e-3, rtol=1e-3), "fused kernel mismatch"

    # Sanity-check the standalone LayerNorm kernel (generic-fn path).
    ln = jax.block_until_ready(layer_norm(x, gamma, beta))
    assert jnp.allclose(ln, _ref_layernorm(x, gamma, beta),
                        atol=1e-4, rtol=1e-4), "layer_norm mismatch"

    print("KERNEL_OK")
</pallas_src>

<mosaic_0001>
module attributes {stable_mosaic.version = 11 : i64} {
  func.func @_prenorm2_cross_attn_kernel(%arg0: i32, %arg1: memref<1x8x32xf32, #tpu.memory_space<vmem>>, %arg2: memref<1x8x32xf32, #tpu.memory_space<vmem>>, %arg3: memref<1x32xf32, #tpu.memory_space<vmem>>, %arg4: memref<1x32xf32, #tpu.memory_space<vmem>>, %arg5: memref<32x32xf32, #tpu.memory_space<vmem>>, %arg6: memref<32x32xf32, #tpu.memory_space<vmem>>, %arg7: memref<32x32xf32, #tpu.memory_space<vmem>>, %arg8: memref<32x32xf32, #tpu.memory_space<vmem>>, %arg9: memref<1x32xf32, #tpu.memory_space<vmem>>, %arg10: memref<1x8x32xf32, #tpu.memory_space<vmem>>) attributes {dimension_semantics = [#tpu.dimension_semantics<parallel>], iteration_bounds = array<i64: 2>, scalar_prefetch = 0 : i64, scratch_operands = 0 : i64, tpu.core_type = #tpu.core_type<tc>, window_params = [{transform_indices = @transform_0, window_bounds = array<i64: 1, 8, 32>}, {transform_indices = @transform_1, window_bounds = array<i64: 1, 8, 32>}, {pipeline_mode = #tpu.pipeline_mode<synchronous>, transform_indices = @transform_2, window_bounds = array<i64: 1, 32>}, {pipeline_mode = #tpu.pipeline_mode<synchronous>, transform_indices = @transform_3, window_bounds = array<i64: 1, 32>}, {pipeline_mode = #tpu.pipeline_mode<synchronous>, transform_indices = @transform_4, window_bounds = array<i64: 32, 32>}, {pipeline_mode = #tpu.pipeline_mode<synchronous>, transform_indices = @transform_5, window_bounds = array<i64: 32, 32>}, {pipeline_mode = #tpu.pipeline_mode<synchronous>, transform_indices = @transform_6, window_bounds = array<i64: 32, 32>}, {pipeline_mode = #tpu.pipeline_mode<synchronous>, transform_indices = @transform_7, window_bounds = array<i64: 32, 32>}, {pipeline_mode = #tpu.pipeline_mode<synchronous>, transform_indices = @transform_8, window_bounds = array<i64: 1, 32>}, {transform_indices = @transform_9, window_bounds = array<i64: 1, 8, 32>}]} {
    %c0 = arith.constant 0 : index
    %c0_0 = arith.constant 0 : index
    %0 = vector.load %arg3[%c0, %c0_0] : memref<1x32xf32, #tpu.memory_space<vmem>>, vector<1x32xf32>
    %c0_1 = arith.constant 0 : index
    %c0_2 = arith.constant 0 : index
    %1 = vector.load %arg4[%c0_1, %c0_2] : memref<1x32xf32, #tpu.memory_space<vmem>>, vector<1x32xf32>
    %c0_3 = arith.constant 0 : index
    %c0_4 = arith.constant 0 : index
    %c0_5 = arith.constant 0 : index
    %2 = vector.load %arg1[%c0_3, %c0_4, %c0_5] : memref<1x8x32xf32, #tpu.memory_space<vmem>>, vector<1x8x32xf32>
    %3 = vector.shape_cast %2 : vector<1x8x32xf32> to vector<8x32xf32>
    %cst = arith.constant dense<0.000000e+00> : vector<8xf32>
    %4 = vector.multi_reduction <add>, %3, %cst [1] : vector<8x32xf32> to vector<8xf32>
    %5 = vector.shape_cast %4 : vector<8xf32> to vector<8x1xf32>
    %cst_6 = arith.constant 3.200000e+01 : f32
    %6 = vector.broadcast %cst_6 : f32 to vector<8x1xf32>
    %7 = arith.divf %5, %6 : vector<8x1xf32>
    %8 = vector.broadcast %7 : vector<8x1xf32> to vector<8x32xf32>
    %9 = arith.subf %3, %8 : vector<8x32xf32>
    %10 = arith.mulf %9, %9 : vector<8x32xf32>
    %cst_7 = arith.constant dense<0.000000e+00> : vector<8xf32>
    %11 = vector.multi_reduction <add>, %10, %cst_7 [1] : vector<8x32xf32> to vector<8xf32>
    %12 = vector.shape_cast %11 : vector<8xf32> to vector<8x1xf32>
    %cst_8 = arith.constant 3.200000e+01 : f32
    %13 = vector.broadcast %cst_8 : f32 to vector<8x1xf32>
    %14 = arith.divf %12, %13 : vector<8x1xf32>
    %cst_9 = arith.constant 9.99999974E-6 : f32
    %15 = vector.broadcast %cst_9 : f32 to vector<8x1xf32>
    %16 = arith.addf %14, %15 : vector<8x1xf32>
    %17 = math.rsqrt %16 : vector<8x1xf32>
    %18 = vector.broadcast %17 : vector<8x1xf32> to vector<8x32xf32>
    %19 = arith.mulf %9, %18 : vector<8x32xf32>
    %20 = vector.broadcast %0 : vector<1x32xf32> to vector<8x32xf32>
    %21 = arith.mulf %19, %20 : vector<8x32xf32>
    %22 = vector.broadcast %1 : vector<1x32xf32> to vector<8x32xf32>
    %23 = arith.addf %21, %22 : vector<8x32xf32>
    %c0_10 = arith.constant 0 : index
    %c0_11 = arith.constant 0 : index
    %c0_12 = arith.constant 0 : index
    %24 = vector.load %arg2[%c0_10, %c0_11, %c0_12] : memref<1x8x32xf32, #tpu.memory_space<vmem>>, vector<1x8x32xf32>
    %25 = vector.shape_cast %24 : vector<1x8x32xf32> to vector<8x32xf32>
    %cst_13 = arith.constant dense<0.000000e+00> : vector<8xf32>
    %26 = vector.multi_reduction <add>, %25, %cst_13 [1] : vector<8x32xf32> to vector<8xf32>
    %27 = vector.shape_cast %26 : vector<8xf32> to vector<8x1xf32>
    %cst_14 = arith.constant 3.200000e+01 : f32
    %28 = vector.broadcast %cst_14 : f32 to vector<8x1xf32>
    %29 = arith.divf %27, %28 : vector<8x1xf32>
    %30 = vector.broadcast %29 : vector<8x1xf32> to vector<8x32xf32>
    %31 = arith.subf %25, %30 : vector<8x32xf32>
    %32 = arith.mulf %31, %31 : vector<8x32xf32>
    %cst_15 = arith.constant dense<0.000000e+00> : vector<8xf32>
    %33 = vector.multi_reduction <add>, %32, %cst_15 [1] : vector<8x32xf32> to vector<8xf32>
    %34 = vector.shape_cast %33 : vector<8xf32> to vector<8x1xf32>
    %cst_16 = arith.constant 3.200000e+01 : f32
    %35 = vector.broadcast %cst_16 : f32 to vector<8x1xf32>
    %36 = arith.divf %34, %35 : vector<8x1xf32>
    %cst_17 = arith.constant 9.99999974E-6 : f32
    %37 = vector.broadcast %cst_17 : f32 to vector<8x1xf32>
    %38 = arith.addf %36, %37 : vector<8x1xf32>
    %39 = math.rsqrt %38 : vector<8x1xf32>
    %40 = vector.broadcast %39 : vector<8x1xf32> to vector<8x32xf32>
    %41 = arith.mulf %31, %40 : vector<8x32xf32>
    %42 = vector.broadcast %0 : vector<1x32xf32> to vector<8x32xf32>
    %43 = arith.mulf %41, %42 : vector<8x32xf32>
    %44 = vector.broadcast %1 : vector<1x32xf32> to vector<8x32xf32>
    %45 = arith.addf %43, %44 : vector<8x32xf32>
    %c0_18 = arith.constant 0 : index
    %c0_19 = arith.constant 0 : index
    %46 = vector.load %arg5[%c0_18, %c0_19] : memref<32x32xf32, #tpu.memory_space<vmem>>, vector<32x32xf32>
    %cst_20 = arith.constant dense<0.000000e+00> : vector<8x32xf32>
    %47 = tpu.matmul %23, %46, %cst_20 {dimension_numbers = #tpu.dot_dimension_numbers<[1], [0], [0], [1], [0, 0, 1, 1], [], []>} : vector<8x32xf32>, vector<32x32xf32>, vector<8x32xf32> -> vector<8x32xf32>
    %cst_21 = arith.constant 2.500000e-01 : f32
    %48 = vector.broadcast %cst_21 : f32 to vector<8x32xf32>
    %49 = arith.mulf %47, %48 : vector<8x32xf32>
    %c0_22 = arith.constant 0 : index
    %c0_23 = arith.constant 0 : index
    %50 = vector.load %arg6[%c0_22, %c0_23] : memref<32x32xf32, #tpu.memory_space<vmem>>, vector<32x32xf32>
    %cst_24 = arith.constant dense<0.000000e+00> : vector<8x32xf32>
    %51 = tpu.matmul %45, %50, %cst_24 {dimension_numbers = #tpu.dot_dimension_numbers<[1], [0], [0], [1], [0, 0, 1, 1], [], []>} : vector<8x32xf32>, vector<32x32xf32>, vector<8x32xf32> -> vector<8x32xf32>
    %c0_25 = arith.constant 0 : index
    %c0_26 = arith.constant 0 : index
    %52 = vector.load %arg7[%c0_25, %c0_26] : memref<32x32xf32, #tpu.memory_space<vmem>>, vector<32x32xf32>
    %cst_27 = arith.constant dense<0.000000e+00> : vector<8x32xf32>
    %53 = tpu.matmul %45, %52, %cst_27 {dimension_numbers = #tpu.dot_dimension_numbers<[1], [0], [0], [1], [0, 0, 1, 1], [], []>} : vector<8x32xf32>, vector<32x32xf32>, vector<8x32xf32> -> vector<8x32xf32>
    %54 = vector.extract_strided_slice %49 {offsets = [0, 0], sizes = [8, 16], strides = [1, 1]} : vector<8x32xf32> to vector<8x16xf32>
    %55 = vector.extract_strided_slice %51 {offsets = [0, 0], sizes = [8, 16], strides = [1, 1]} : vector<8x32xf32> to vector<8x16xf32>
    %56 = vector.extract_strided_slice %53 {offsets = [0, 0], sizes = [8, 16], strides = [1, 1]} : vector<8x32xf32> to vector<8x16xf32>
    %cst_28 = arith.constant dense<0.000000e+00> : vector<8x8xf32>
    %57 = tpu.matmul %54, %55, %cst_28 {dimension_numbers = #tpu.dot_dimension_numbers<[1], [1], [0], [0], [0, 0, 1, 0], [], []>} : vector<8x16xf32>, vector<8x16xf32>, vector<8x8xf32> -> vector<8x8xf32>
    %cst_29 = arith.constant dense<0xFF800000> : vector<8xf32>
    %58 = vector.multi_reduction <maximumf>, %57, %cst_29 [1] : vector<8x8xf32> to vector<8xf32>
    %59 = vector.shape_cast %58 : vector<8xf32> to vector<8x1xf32>
    %60 = vector.broadcast %59 : vector<8x1xf32> to vector<8x8xf32>
    %61 = arith.subf %57, %60 : vector<8x8xf32>
    %62 = math.exp %61 : vector<8x8xf32>
    %cst_30 = arith.constant dense<0.000000e+00> : vector<8xf32>
    %63 = vector.multi_reduction <add>, %62, %cst_30 [1] : vector<8x8xf32> to vector<8xf32>
    %64 = vector.shape_cast %63 : vector<8xf32> to vector<8x1xf32>
    %65 = tpu.reciprocal %64 {approx = true} : vector<8x1xf32> -> vector<8x1xf32>
    %66 = vector.broadcast %65 : vector<8x1xf32> to vector<8x8xf32>
    %67 = arith.mulf %62, %66 : vector<8x8xf32>
    %cst_31 = arith.constant dense<0.000000e+00> : vector<8x16xf32>
    %68 = tpu.matmul %67, %56, %cst_31 {dimension_numbers = #tpu.dot_dimension_numbers<[1], [0], [0], [1], [0, 0, 1, 1], [], []>} : vector<8x8xf32>, vector<8x16xf32>, vector<8x16xf32> -> vector<8x16xf32>
    %69 = vector.extract_strided_slice %49 {offsets = [0, 16], sizes = [8, 16], strides = [1, 1]} : vector<8x32xf32> to vector<8x16xf32>
    %70 = vector.extract_strided_slice %51 {offsets = [0, 16], sizes = [8, 16], strides = [1, 1]} : vector<8x32xf32> to vector<8x16xf32>
    %71 = vector.extract_strided_slice %53 {offsets = [0, 16], sizes = [8, 16], strides = [1, 1]} : vector<8x32xf32> to vector<8x16xf32>
    %cst_32 = arith.constant dense<0.000000e+00> : vector<8x8xf32>
    %72 = tpu.matmul %69, %70, %cst_32 {dimension_numbers = #tpu.dot_dimension_numbers<[1], [1], [0], [0], [0, 0, 1, 0], [], []>} : vector<8x16xf32>, vector<8x16xf32>, vector<8x8xf32> -> vector<8x8xf32>
    %cst_33 = arith.constant dense<0xFF800000> : vector<8xf32>
    %73 = vector.multi_reduction <maximumf>, %72, %cst_33 [1] : vector<8x8xf32> to vector<8xf32>
    %74 = vector.shape_cast %73 : vector<8xf32> to vector<8x1xf32>
    %75 = vector.broadcast %74 : vector<8x1xf32> to vector<8x8xf32>
    %76 = arith.subf %72, %75 : vector<8x8xf32>
    %77 = math.exp %76 : vector<8x8xf32>
    %cst_34 = arith.constant dense<0.000000e+00> : vector<8xf32>
    %78 = vector.multi_reduction <add>, %77, %cst_34 [1] : vector<8x8xf32> to vector<8xf32>
    %79 = vector.shape_cast %78 : vector<8xf32> to vector<8x1xf32>
    %80 = tpu.reciprocal %79 {approx = true} : vector<8x1xf32> -> vector<8x1xf32>
    %81 = vector.broadcast %80 : vector<8x1xf32> to vector<8x8xf32>
    %82 = arith.mulf %77, %81 : vector<8x8xf32>
    %cst_35 = arith.constant dense<0.000000e+00> : vector<8x16xf32>
    %83 = tpu.matmul %82, %71, %cst_35 {dimension_numbers = #tpu.dot_dimension_numbers<[1], [0], [0], [1], [0, 0, 1, 1], [], []>} : vector<8x8xf32>, vector<8x16xf32>, vector<8x16xf32> -> vector<8x16xf32>
    %84 = tpu.concatenate %68, %83 in 1 : vector<8x16xf32>, vector<8x16xf32> -> vector<8x32xf32>
    %c0_36 = arith.constant 0 : index
    %c0_37 = arith.constant 0 : index
    %85 = vector.load %arg8[%c0_36, %c0_37] : memref<32x32xf32, #tpu.memory_space<vmem>>, vector<32x32xf32>
    %cst_38 = arith.constant dense<0.000000e+00> : vector<8x32xf32>
    %86 = tpu.matmul %84, %85, %cst_38 {dimension_numbers = #tpu.dot_dimension_numbers<[1], [0], [0], [1], [0, 0, 1, 1], [], []>} : vector<8x32xf32>, vector<32x32xf32>, vector<8x32xf32> -> vector<8x32xf32>
    %c0_39 = arith.constant 0 : index
    %c0_40 = arith.constant 0 : index
    %87 = vector.load %arg9[%c0_39, %c0_40] : memref<1x32xf32, #tpu.memory_space<vmem>>, vector<1x32xf32>
    %88 = vector.broadcast %87 : vector<1x32xf32> to vector<8x32xf32>
    %89 = arith.addf %86, %88 : vector<8x32xf32>
    %c0_41 = arith.constant 0 : index
    %c0_42 = arith.constant 0 : index
    %c0_43 = arith.constant 0 : index
    %90 = vector.load %arg10[%c0_41, %c0_42, %c0_43] : memref<1x8x32xf32, #tpu.memory_space<vmem>>, vector<1x8x32xf32>
    %91 = vector.shape_cast %90 : vector<1x8x32xf32> to vector<8x32xf32>
    %92 = vector.shape_cast %89 : vector<8x32xf32> to vector<1x8x32xf32>
    tpu.vector_store %arg10[%c0_41, %c0_42, %c0_43], %92 {strides = array<i32>} : memref<1x8x32xf32, #tpu.memory_space<vmem>>, vector<1x8x32xf32>,
    return
  }
  func.func @transform_0(%arg0: i32) -> (i32, i32, i32) {
    %c0_i32 = arith.constant 0 : i32
    %c0_i32_0 = arith.constant 0 : i32
    %c0_i32_1 = arith.constant 0 : i32
    return %arg0, %c0_i32, %c0_i32_0 : i32, i32, i32
  }
  func.func @transform_1(%arg0: i32) -> (i32, i32, i32) {
    %c0_i32 = arith.constant 0 : i32
    %c0_i32_0 = arith.constant 0 : i32
    %c0_i32_1 = arith.constant 0 : i32
    return %arg0, %c0_i32, %c0_i32_0 : i32, i32, i32
  }
  func.func @transform_2(%arg0: i32) -> (i32, i32) {
    %c0_i32 = arith.constant 0 : i32
    %c0_i32_0 = arith.constant 0 : i32
    %c0_i32_1 = arith.constant 0 : i32
    return %c0_i32, %c0_i32_0 : i32, i32
  }
  func.func @transform_3(%arg0: i32) -> (i32, i32) {
    %c0_i32 = arith.constant 0 : i32
    %c0_i32_0 = arith.constant 0 : i32
    %c0_i32_1 = arith.constant 0 : i32
    return %c0_i32, %c0_i32_0 : i32, i32
  }
  func.func @transform_4(%arg0: i32) -> (i32, i32) {
    %c0_i32 = arith.constant 0 : i32
    %c0_i32_0 = arith.constant 0 : i32
    %c0_i32_1 = arith.constant 0 : i32
    return %c0_i32, %c0_i32_0 : i32, i32
  }
  func.func @transform_5(%arg0: i32) -> (i32, i32) {
    %c0_i32 = arith.constant 0 : i32
    %c0_i32_0 = arith.constant 0 : i32
    %c0_i32_1 = arith.constant 0 : i32
    return %c0_i32, %c0_i32_0 : i32, i32
  }
  func.func @transform_6(%arg0: i32) -> (i32, i32) {
    %c0_i32 = arith.constant 0 : i32
    %c0_i32_0 = arith.constant 0 : i32
    %c0_i32_1 = arith.constant 0 : i32
    return %c0_i32, %c0_i32_0 : i32, i32
  }
  func.func @transform_7(%arg0: i32) -> (i32, i32) {
    %c0_i32 = arith.constant 0 : i32
    %c0_i32_0 = arith.constant 0 : i32
    %c0_i32_1 = arith.constant 0 : i32
    return %c0_i32, %c0_i32_0 : i32, i32
  }
  func.func @transform_8(%arg0: i32) -> (i32, i32) {
    %c0_i32 = arith.constant 0 : i32
    %c0_i32_0 = arith.constant 0 : i32
    %c0_i32_1 = arith.constant 0 : i32
    return %c0_i32, %c0_i32_0 : i32, i32
  }
  func.func @transform_9(%arg0: i32) -> (i32, i32, i32) {
    %c0_i32 = arith.constant 0 : i32
    %c0_i32_0 = arith.constant 0 : i32
    %c0_i32_1 = arith.constant 0 : i32
    return %arg0, %c0_i32, %c0_i32_0 : i32, i32, i32
  }
}

</mosaic_0001>

<llo_original>
// kernel: tpu_custom_call.1
$region0: #{tpu_custom_call.1}
  #allocation0 [shape = 'u32[]', space=smem, size = 0x4, offset = 0x4, fixed_abs, tag = 'smem constant byte address 0x4 - core index']
  #allocation1 [shape = 'u32[144,128]{1,0:T(1,128)}', space=vmem, size = 0x12000, scoped, tag = 'internal scratch']
  %s0 = inlined_call_operand.hbm [shape: f32[2,8,32], index: 0, kind: input, shape index: {}]
  %s1 = inlined_call_operand.hbm [shape: f32[2,8,32], index: 1, kind: input, shape index: {}]
  %s2 = inlined_call_operand.vmem [shape: f32[1,32], index: 2, kind: input, shape index: {}]
  %s3 = inlined_call_operand.vmem [shape: f32[1,32], index: 3, kind: input, shape index: {}]
  %s4 = inlined_call_operand.hbm [shape: f32[32,32], index: 4, kind: input, shape index: {}]
  %s5 = inlined_call_operand.hbm [shape: f32[32,32], index: 5, kind: input, shape index: {}]
  %s6 = inlined_call_operand.hbm [shape: f32[32,32], index: 6, kind: input, shape index: {}]
  %s7 = inlined_call_operand.hbm [shape: f32[32,32], index: 7, kind: input, shape index: {}]
  %s8 = inlined_call_operand.vmem [shape: f32[1,32], index: 8, kind: input, shape index: {}]
  %s9 = inlined_call_operand.hbm [shape: f32[2,8,32], index: 9, kind: output, shape index: {}]
  %s10 = sld [smem:[#allocation0]]
  $region93: #{tpu_custom_call.1} parent=0
    _
  %s12 = ssub.s32 1, %s10
  %s13 = scalar_select 0, %s12, %s10
  $region1: #{tpu_custom_call.1} parent=0
    #allocation2 [shape = 'u8[8192]{0}', space=vmem, size = 0x2000, scoped, tag = 'input window, operand 0']
    #allocation3 [shape = 's32[2]{0}', space=sflag, size = 0x8, scoped, tag = 'scoped memory for tpu_custom_call.1']
    #allocation4 [shape = 's32[2]{0}', space=sflag, size = 0x8, scoped, tag = 'scoped memory for tpu_custom_call.1']
    #allocation5 [shape = 'u8[8192]{0}', space=vmem, size = 0x2000, scoped, tag = 'input window, operand 1']
    #allocation6 [shape = 's32[2]{0}', space=sflag, size = 0x8, scoped, tag = 'scoped memory for tpu_custom_call.1']
    #allocation7 [shape = 'u8[16384]{0}', space=vmem, size = 0x4000, scoped, tag = 'input window, operand 4, single buffered']
    #allocation8 [shape = 'u8[16384]{0}', space=vmem, size = 0x4000, scoped, tag = 'input window, operand 5, single buffered']
    #allocation9 [shape = 's32[1]{0}', space=sflag, size = 0x4, scoped, tag = 'scoped memory for tpu_custom_call.1']
    #allocation10 [shape = 'u8[16384]{0}', space=vmem, size = 0x4000, scoped, tag = 'input window, operand 6, single buffered']
    #allocation11 [shape = 'u8[16384]{0}', space=vmem, size = 0x4000, scoped, tag = 'input window, operand 7, single buffered']
    #allocation12 [shape = 's32[1]{0}', space=sflag, size = 0x4, scoped, tag = 'scoped memory for tpu_custom_call.1']
    #allocation13 [shape = 'u8[8192]{0}', space=vmem, size = 0x2000, scoped, tag = 'output window, operand 0']
    %14 = vsyncpa [#allocation3], 0
    %s15 = scalar_lea.sflag [#allocation3], 1
    %16 = vsyncpa %s15, 0
    %17 = vsyncpa [#allocation6], 0
    %s18 = scalar_lea.sflag [#allocation6], 1
    %19 = vsyncpa %s18, 0
    %20 = vsyncpa [#allocation9], 0
    %21 = vsyncpa [#allocation12], 0
    %22 = vsyncpa [#allocation4], 0
    %s23 = scalar_lea.sflag [#allocation4], 1
    %24 = vsyncpa %s23, 0
    loop: start=0, step=1, limit=4
    $region2: #{tpu_custom_call.1} parent=1 // loop_pre_header
      _
    $region3: #{tpu_custom_call.1} parent=1 // loop_header
      %s26 = sphi 0, %s30
      %p27 = scmp.ge.s32.totalorder %s26, 4
      %s36 = sphi 0, %s38
      %s39 = sphi 0, %s36
      %s40 = sphi 0, %s39
      %s56 = sphi 0, %s40
      %s62 = sphi 0, %s64
      %s65 = sphi 0, %s62
      %s66 = sphi 0, %s65
      %s82 = sphi 0, %s66
      %s86 = sphi 0, %s86
      %s88 = sphi 0, %s86
      %s89 = sphi 0, %s88
      %s103 = sphi 0, %s89
      %s107 = sphi 0, %s107
      %s109 = sphi 0, %s107
      %s110 = sphi 0, %s109
      %s124 = sphi 0, %s110
      %s128 = sphi 0, %s128
      %s130 = sphi 0, %s128
      %s131 = sphi 0, %s130
      %s145 = sphi 0, %s131
      %s149 = sphi 0, %s149
      %s151 = sphi 0, %s149
      %s152 = sphi 0, %s151
      %s166 = sphi 0, %s152
      %s170 = sphi 0, %s170
      %s172 = sphi 0, %s170
      %s173 = sphi 0, %s172
      %s187 = sphi 0, %s173
      %s191 = sphi 0, %s191
      %s193 = sphi 0, %s191
      %s194 = sphi 0, %s193
      %s208 = sphi 0, %s194
      %s212 = sphi 0, %s212
      %s214 = sphi 0, %s212
      %s215 = sphi 0, %s214
      %s229 = sphi 0, %s215
      %s235 = sphi 0, %s237
      %s238 = sphi 0, %s235
      %s239 = sphi 0, %s238
      %s255 = sphi 0, %s239
    $region4: #{tpu_custom_call.1} parent=1 // loop_header_branch
      %29 = sbr.rel (%p27) target = $region8
    $region5: #{tpu_custom_call.1} parent=1 // loop_body
      %s31 = ssub.s32 %s26, 1
      %s32 = ssub.s32 %s26, 2
      %s33 = sadd.s32 %s26, 1
      %s34 = ssub.s32 %s26, %s33
      %p35 = scmp.eq.s32.totalorder %s34, 0
      %s37 = sadd.s32 %s36, 1
      %s38 = scalar_select %p35, %s36, %s37
      %p41 = pneg %p35
      %p42 = scmp.eq.s32.totalorder %s26, 1
      %p43 = por %p41, %p42
      %p44 = scmp.ne.s32.totalorder %s36, %s39
      %p45 = scmp.eq.s32.totalorder %s26, 0
      %p46 = por %p44, %p45
      %p47 = scmp.ne.s32.totalorder %s36, %s39
      %p48 = scmp.eq.s32.totalorder %s31, 1
      %p49 = por %p47, %p48
      %p50 = scmp.ne.s32.totalorder %s39, %s40
      %p51 = scmp.eq.s32.totalorder %s31, 0
      %p52 = por %p50, %p51
      %p53 = scmp.ne.s32.totalorder %s39, %s40
      %p54 = scmp.eq.s32.totalorder %s32, 1
      %p55 = por %p53, %p54
      %p57 = scmp.ne.s32.totalorder %s40, %s56
      %p58 = scmp.eq.s32.totalorder %s32, 0
      %p59 = por %p57, %p58
      %s60 = ssub.s32 %s26, %s33
      %p61 = scmp.eq.s32.totalorder %s60, 0
      %s63 = sadd.s32 %s62, 1
      %s64 = scalar_select %p61, %s62, %s63
      %p67 = pneg %p61
      %p68 = scmp.eq.s32.totalorder %s26, 1
      %p69 = por %p67, %p68
      %p70 = scmp.ne.s32.totalorder %s62, %s65
      %p71 = scmp.eq.s32.totalorder %s26, 0
      %p72 = por %p70, %p71
      %p73 = scmp.ne.s32.totalorder %s62, %s65
      %p74 = scmp.eq.s32.totalorder %s31, 1
      %p75 = por %p73, %p74
      %p76 = scmp.ne.s32.totalorder %s65, %s66
      %p77 = scmp.eq.s32.totalorder %s31, 0
      %p78 = por %p76, %p77
      %p79 = scmp.ne.s32.totalorder %s65, %s66
      %p80 = scmp.eq.s32.totalorder %s32, 1
      %p81 = por %p79, %p80
      %p83 = scmp.ne.s32.totalorder %s66, %s82
      %p84 = scmp.eq.s32.totalorder %s32, 0
      %p85 = por %p83, %p84
      %s87 = sadd.s32 %s86, 1
      %p90 = scmp.eq.s32.totalorder %s26, 1
      %p91 = scmp.ne.s32.totalorder %s86, %s88
      %p92 = scmp.eq.s32.totalorder %s26, 0
      %p93 = por %p91, %p92
      %p94 = scmp.ne.s32.totalorder %s86, %s88
      %p95 = scmp.eq.s32.totalorder %s31, 1
      %p96 = por %p94, %p95
      %p97 = scmp.ne.s32.totalorder %s88, %s89
      %p98 = scmp.eq.s32.totalorder %s31, 0
      %p99 = por %p97, %p98
      %p100 = scmp.ne.s32.totalorder %s88, %s89
      %p101 = scmp.eq.s32.totalorder %s32, 1
      %p102 = por %p100, %p101
      %p104 = scmp.ne.s32.totalorder %s89, %s103
      %p105 = scmp.eq.s32.totalorder %s32, 0
      %p106 = por %p104, %p105
      %s108 = sadd.s32 %s107, 1
      %p111 = scmp.eq.s32.totalorder %s26, 1
      %p112 = scmp.ne.s32.totalorder %s107, %s109
      %p113 = scmp.eq.s32.totalorder %s26, 0
      %p114 = por %p112, %p113
      %p115 = scmp.ne.s32.totalorder %s107, %s109
      %p116 = scmp.eq.s32.totalorder %s31, 1
      %p117 = por %p115, %p116
      %p118 = scmp.ne.s32.totalorder %s109, %s110
      %p119 = scmp.eq.s32.totalorder %s31, 0
      %p120 = por %p118, %p119
      %p121 = scmp.ne.s32.totalorder %s109, %s110
      %p122 = scmp.eq.s32.totalorder %s32, 1
      %p123 = por %p121, %p122
      %p125 = scmp.ne.s32.totalorder %s110, %s124
      %p126 = scmp.eq.s32.totalorder %s32, 0
      %p127 = por %p125, %p126
      %s129 = sadd.s32 %s128, 1
      %p132 = scmp.eq.s32.totalorder %s26, 1
      %p133 = scmp.ne.s32.totalorder %s128, %s130
      %p134 = scmp.eq.s32.totalorder %s26, 0
      %p135 = por %p133, %p134
      %p136 = scmp.ne.s32.totalorder %s128, %s130
      %p137 = scmp.eq.s32.totalorder %s31, 1
      %p138 = por %p136, %p137
      %p139 = scmp.ne.s32.totalorder %s130, %s131
      %p140 = scmp.eq.s32.totalorder %s31, 0
      %p141 = por %p139, %p140
      %p142 = scmp.ne.s32.totalorder %s130, %s131
      %p143 = scmp.eq.s32.totalorder %s32, 1
      %p144 = por %p142, %p143
      %p146 = scmp.ne.s32.totalorder %s131, %s145
      %p147 = scmp.eq.s32.totalorder %s32, 0
      %p148 = por %p146, %p147
      %s150 = sadd.s32 %s149, 1
      %p153 = scmp.eq.s32.totalorder %s26, 1
      %p154 = scmp.ne.s32.totalorder %s149, %s151
      %p155 = scmp.eq.s32.totalorder %s26, 0
      %p156 = por %p154, %p155
      %p157 = scmp.ne.s32.totalorder %s149, %s151
      %p158 = scmp.eq.s32.totalorder %s31, 1
      %p159 = por %p157, %p158
      %p160 = scmp.ne.s32.totalorder %s151, %s152
      %p161 = scmp.eq.s32.totalorder %s31, 0
      %p162 = por %p160, %p161
      %p163 = scmp.ne.s32.totalorder %s151, %s152
      %p164 = scmp.eq.s32.totalorder %s32, 1
      %p165 = por %p163, %p164
      %p167 = scmp.ne.s32.totalorder %s152, %s166
      %p168 = scmp.eq.s32.totalorder %s32, 0
      %p169 = por %p167, %p168
      %s171 = sadd.s32 %s170, 1
      %p174 = scmp.eq.s32.totalorder %s26, 1
      %p175 = scmp.ne.s32.totalorder %s170, %s172
      %p176 = scmp.eq.s32.totalorder %s26, 0
      %p177 = por %p175, %p176
      %p178 = scmp.ne.s32.totalorder %s170, %s172
      %p179 = scmp.eq.s32.totalorder %s31, 1
      %p180 = por %p178, %p179
      %p181 = scmp.ne.s32.totalorder %s172, %s173
      %p182 = scmp.eq.s32.totalorder %s31, 0
      %p183 = por %p181, %p182
      %p184 = scmp.ne.s32.totalorder %s172, %s173
      %p185 = scmp.eq.s32.totalorder %s32, 1
      %p186 = por %p184, %p185
      %p188 = scmp.ne.s32.totalorder %s173, %s187
      %p189 = scmp.eq.s32.totalorder %s32, 0
      %p190 = por %p188, %p189
      %s192 = sadd.s32 %s191, 1
      %p195 = scmp.eq.s32.totalorder %s26, 1
      %p196 = scmp.ne.s32.totalorder %s191, %s193
      %p197 = scmp.eq.s32.totalorder %s26, 0
      %p198 = por %p196, %p197
      %p199 = scmp.ne.s32.totalorder %s191, %s193
      %p200 = scmp.eq.s32.totalorder %s31, 1
      %p201 = por %p199, %p200
      %p202 = scmp.ne.s32.totalorder %s193, %s194
      %p203 = scmp.eq.s32.totalorder %s31, 0
      %p204 = por %p202, %p203
      %p205 = scmp.ne.s32.totalorder %s193, %s194
      %p206 = scmp.eq.s32.totalorder %s32, 1
      %p207 = por %p205, %p206
      %p209 = scmp.ne.s32.totalorder %s194, %s208
      %p210 = scmp.eq.s32.totalorder %s32, 0
      %p211 = por %p209, %p210
      %s213 = sadd.s32 %s212, 1
      %p216 = scmp.eq.s32.totalorder %s26, 1
      %p217 = scmp.ne.s32.totalorder %s212, %s214
      %p218 = scmp.eq.s32.totalorder %s26, 0
      %p219 = por %p217, %p218
      %p220 = scmp.ne.s32.totalorder %s212, %s214
      %p221 = scmp.eq.s32.totalorder %s31, 1
      %p222 = por %p220, %p221
      %p223 = scmp.ne.s32.totalorder %s214, %s215
      %p224 = scmp.eq.s32.totalorder %s31, 0
      %p225 = por %p223, %p224
      %p226 = scmp.ne.s32.totalorder %s214, %s215
      %p227 = scmp.eq.s32.totalorder %s32, 1
      %p228 = por %p226, %p227
      %p230 = scmp.ne.s32.totalorder %s215, %s229
      %p231 = scmp.eq.s32.totalorder %s32, 0
      %p232 = por %p230, %p231
      %s233 = ssub.s32 %s26, %s33
      %p234 = scmp.eq.s32.totalorder %s233, 0
      %s236 = sadd.s32 %s235, 1
      %s237 = scalar_select %p234, %s235, %s236
      %p240 = pneg %p234
      %p241 = scmp.eq.s32.totalorder %s26, 1
      %p242 = por %p240, %p241
      %p243 = scmp.ne.s32.totalorder %s235, %s238
      %p244 = scmp.eq.s32.totalorder %s26, 0
      %p245 = por %p243, %p244
      %p246 = scmp.ne.s32.totalorder %s235, %s238
      %p247 = scmp.eq.s32.totalorder %s31, 1
      %p248 = por %p246, %p247
      %p249 = scmp.ne.s32.totalorder %s238, %s239
      %p250 = scmp.eq.s32.totalorder %s31, 0
      %p251 = por %p249, %p250
      %p252 = scmp.ne.s32.totalorder %s238, %s239
      %p253 = scmp.eq.s32.totalorder %s32, 1
      %p254 = por %p252, %p253
      %p256 = scmp.ne.s32.totalorder %s239, %s255
      %p257 = scmp.eq.s32.totalorder %s32, 0
      %p258 = por %p256, %p257
      %p259 = scmp.le.s32.totalorder 1, %s26
      %p260 = scmp.lt.s32.totalorder %s26, 3
      %p261 = pnand %p259, %p260
      %p262 = pneg %p261
      // Predicated region
      $region9: #{tpu_custom_call.1} parent=5 // pred_check
        _
      $region10: #{tpu_custom_call.1} parent=5 // pred_check_branch
        %264 = sbr.rel (%p261) target = $region12
      $region11: #{tpu_custom_call.1} parent=5 // pred_region
        %s265 = ssub.s32 %s26, 1
        // Predicated region
        $region13: #{tpu_custom_call.1} parent=11 // pred_check
          %p266 = pneg %p99
        $region14: #{tpu_custom_call.1} parent=11 // pred_check_branch
          %268 = sbr.rel (%p266) target = $region16
        $region15: #{tpu_custom_call.1} parent=11 // pred_region
          _
        $region16: #{tpu_custom_call.1} parent=11 // pred_fallthru
          _
        // Predicated region
        $region17: #{tpu_custom_call.1} parent=11 // pred_check
          %p269 = pneg %p120
        $region18: #{tpu_custom_call.1} parent=11 // pred_check_branch
          %271 = sbr.rel (%p269) target = $region20
        $region19: #{tpu_custom_call.1} parent=11 // pred_region
          _
        $region20: #{tpu_custom_call.1} parent=11 // pred_fallthru
          _
        // Predicated region
        $region21: #{tpu_custom_call.1} parent=11 // pred_check
          %p272 = pneg %p141
        $region22: #{tpu_custom_call.1} parent=11 // pred_check_branch
          %274 = sbr.rel (%p272) target = $region24
        $region23: #{tpu_custom_call.1} parent=11 // pred_region
          %s276 = ssub.s32 512, 512
          %277 = vsyncadd [#allocation6], %s276
          %s278 = sshll.u32 [#allocation7], 4
          %s279 = int_to_ptr.vmem [resolvable:$true] %s278
          %284 = dma.hbm_to_vmem [thread:$0]  %s4, 512, %s279, [#allocation6], 128, 128, 8
        $region24: #{tpu_custom_call.1} parent=11 // pred_fallthru
          _
        // Predicated region
        $region25: #{tpu_custom_call.1} parent=11 // pred_check
          %p285 = pneg %p162
        $region26: #{tpu_custom_call.1} parent=11 // pred_check_branch
          %287 = sbr.rel (%p285) target = $region28
        $region27: #{tpu_custom_call.1} parent=11 // pred_region
          %s289 = ssub.s32 512, 512
          %290 = vsyncadd [#allocation9], %s289
          %s291 = sshll.u32 [#allocation8], 4
          %s292 = int_to_ptr.vmem [resolvable:$true] %s291
          %297 = dma.hbm_to_vmem [thread:$0]  %s5, 512, %s292, [#allocation9], 128, 128, 8
        $region28: #{tpu_custom_call.1} parent=11 // pred_fallthru
          _
        // Predicated region
        $region29: #{tpu_custom_call.1} parent=11 // pred_check
          %p298 = pneg %p183
        $region30: #{tpu_custom_call.1} parent=11 // pred_check_branch
          %300 = sbr.rel (%p298) target = $region32
        $region31: #{tpu_custom_call.1} parent=11 // pred_region
          %s302 = ssub.s32 512, 512
          %303 = vsyncadd [#allocation9], %s302
          %s304 = sshll.u32 [#allocation10], 4
          %s305 = int_to_ptr.vmem [resolvable:$true] %s304
          %310 = dma.hbm_to_vmem [thread:$0]  %s6, 512, %s305, [#allocation9], 128, 128, 8
        $region32: #{tpu_custom_call.1} parent=11 // pred_fallthru
          _
        // Predicated region
        $region33: #{tpu_custom_call.1} parent=11 // pred_check
          %p311 = pneg %p204
        $region34: #{tpu_custom_call.1} parent=11 // pred_check_branch
          %313 = sbr.rel (%p311) target = $region36
        $region35: #{tpu_custom_call.1} parent=11 // pred_region
          %s315 = ssub.s32 512, 512
          %316 = vsyncadd [#allocation12], %s315
          %s317 = sshll.u32 [#allocation11], 4
          %s318 = int_to_ptr.vmem [resolvable:$true] %s317
          %323 = dma.hbm_to_vmem [thread:$0]  %s7, 512, %s318, [#allocation12], 128, 128, 8
        $region36: #{tpu_custom_call.1} parent=11 // pred_fallthru
          _
        // Predicated region
        $region37: #{tpu_custom_call.1} parent=11 // pred_check
          %p324 = pneg %p225
        $region38: #{tpu_custom_call.1} parent=11 // pred_check_branch
          %326 = sbr.rel (%p324) target = $region40
        $region39: #{tpu_custom_call.1} parent=11 // pred_region
          _
        $region40: #{tpu_custom_call.1} parent=11 // pred_fallthru
          _
      $region12: #{tpu_custom_call.1} parent=5 // pred_fallthru
        _
      %p327 = scmp.lt.s32.totalorder %s26, 2
      // Predicated region
      $region41: #{tpu_custom_call.1} parent=5 // pred_check
        %p328 = pneg %p327
      $region42: #{tpu_custom_call.1} parent=5 // pred_check_branch
        %330 = sbr.rel (%p328) target = $region44
      $region43: #{tpu_custom_call.1} parent=5 // pred_region
        // Predicated region
        $region45: #{tpu_custom_call.1} parent=43 // pred_check
          %p331 = pneg %p46
        $region46: #{tpu_custom_call.1} parent=43 // pred_check_branch
          %333 = sbr.rel (%p331) target = $region48
        $region47: #{tpu_custom_call.1} parent=43 // pred_region
          %s334 = sand.u32 %s36, 1
          %s335 = scalar_lea.sflag [#allocation3], %s334
          %s336 = sand.u32 %s36, 1
          %s337 = smul.addr %s336, 8
          %s338 = scalar_lea.vmem [#allocation2], %s337
          %s340 = ssub.s32 128, 128
          %341 = vsyncadd %s335, %s340
          %s342 = smul.addr %s26, 128
          %s343 = scalar_lea.hbm %s0, %s342
          %s345 = sshll.u32 %s338, 4
          %s346 = int_to_ptr.vmem [resolvable:$true] %s345
          %348 = dma.hbm_to_vmem [thread:$0]  %s343, 128, %s346, %s335
        $region48: #{tpu_custom_call.1} parent=43 // pred_fallthru
          _
        // Predicated region
        $region49: #{tpu_custom_call.1} parent=43 // pred_check
          %p349 = pneg %p72
        $region50: #{tpu_custom_call.1} parent=43 // pred_check_branch
          %351 = sbr.rel (%p349) target = $region52
        $region51: #{tpu_custom_call.1} parent=43 // pred_region
          %s352 = sand.u32 %s26, 1
          %s353 = scalar_lea.sflag [#allocation6], %s352
          %s354 = sand.u32 %s62, 1
          %s355 = smul.addr %s354, 8
          %s356 = scalar_lea.vmem [#allocation5], %s355
          %s358 = ssub.s32 128, 128
          %359 = vsyncadd %s353, %s358
          %s360 = smul.addr %s26, 128
          %s361 = scalar_lea.hbm %s1, %s360
          %s363 = sshll.u32 %s356, 4
          %s364 = int_to_ptr.vmem [resolvable:$true] %s363
          %366 = dma.hbm_to_vmem [thread:$0]  %s361, 128, %s364, %s353
        $region52: #{tpu_custom_call.1} parent=43 // pred_fallthru
          _
      $region44: #{tpu_custom_call.1} parent=5 // pred_fallthru
        _
      %p367 = scmp.le.s32.totalorder 1, %s26
      %p368 = scmp.lt.s32.totalorder %s26, 3
      %p369 = pnand %p367, %p368
      %p370 = pneg %p369
      // Predicated region
      $region53: #{tpu_custom_call.1} parent=5 // pred_check
        _
      $region54: #{tpu_custom_call.1} parent=5 // pred_check_branch
        %372 = sbr.rel (%p369) target = $region56
      $region55: #{tpu_custom_call.1} parent=5 // pred_region
        %s373 = ssub.s32 %s26, 1
        %s374 = sand.u32 %s39, 1
        %s375 = scalar_lea.sflag [#allocation3], %s374
        %s376 = sand.u32 %s39, 1
        %s377 = smul.addr %s376, 8
        %s378 = scalar_lea.vmem [#allocation2], %s377
        // Predicated region
        $region57: #{tpu_custom_call.1} parent=55 // pred_check
          %p379 = pneg %p52
        $region58: #{tpu_custom_call.1} parent=55 // pred_check_branch
          %381 = sbr.rel (%p379) target = $region60
        $region59: #{tpu_custom_call.1} parent=55 // pred_region
          %382 = dma.done %s375, 128
        $region60: #{tpu_custom_call.1} parent=55 // pred_fallthru
          _
        %s383 = sand.u32 %s31, 1
        %s384 = scalar_lea.sflag [#allocation6], %s383
        %s385 = sand.u32 %s65, 1
        %s386 = smul.addr %s385, 8
        %s387 = scalar_lea.vmem [#allocation5], %s386
        // Predicated region
        $region61: #{tpu_custom_call.1} parent=55 // pred_check
          %p388 = pneg %p78
        $region62: #{tpu_custom_call.1} parent=55 // pred_check_branch
          %390 = sbr.rel (%p388) target = $region64
        $region63: #{tpu_custom_call.1} parent=55 // pred_region
          %391 = dma.done %s384, 128
        $region64: #{tpu_custom_call.1} parent=55 // pred_fallthru
          _
        // Predicated region
        $region65: #{tpu_custom_call.1} parent=55 // pred_check
          %p392 = pneg %p141
        $region66: #{tpu_custom_call.1} parent=55 // pred_check_branch
          %394 = sbr.rel (%p392) target = $region68
        $region67: #{tpu_custom_call.1} parent=55 // pred_region
          %395 = dma.done [#allocation6], 512
        $region68: #{tpu_custom_call.1} parent=55 // pred_fallthru
          _
        // Predicated region
        $region69: #{tpu_custom_call.1} parent=55 // pred_check
          %p396 = pneg %p162
        $region70: #{tpu_custom_call.1} parent=55 // pred_check_branch
          %398 = sbr.rel (%p396) target = $region72
        $region71: #{tpu_custom_call.1} parent=55 // pred_region
          %399 = dma.done [#allocation9], 512
        $region72: #{tpu_custom_call.1} parent=55 // pred_fallthru
          _
        // Predicated region
        $region73: #{tpu_custom_call.1} parent=55 // pred_check
          %p400 = pneg %p183
        $region74: #{tpu_custom_call.1} parent=55 // pred_check_branch
          %402 = sbr.rel (%p400) target = $region76
        $region75: #{tpu_custom_call.1} parent=55 // pred_region
          %403 = dma.done [#allocation9], 512
        $region76: #{tpu_custom_call.1} parent=55 // pred_fallthru
          _
        // Predicated region
        $region77: #{tpu_custom_call.1} parent=55 // pred_check
          %p404 = pneg %p204
        $region78: #{tpu_custom_call.1} parent=55 // pred_check_branch
          %406 = sbr.rel (%p404) target = $region80
        $region79: #{tpu_custom_call.1} parent=55 // pred_region
          %407 = dma.done [#allocation12], 512
        $region80: #{tpu_custom_call.1} parent=55 // pred_fallthru
          _
        %s408 = sand.u32 %s39, 1
        %s409 = scalar_lea.sflag [#allocation3], %s408
        %s410 = sand.u32 %s39, 1
        %s411 = smul.addr %s410, 8
        %s412 = scalar_lea.vmem [#allocation2], %s411
        %p413 = pneg %p52
        %p414 = pneg %p49
        %s415 = sand.u32 %s31, 1
        %s416 = scalar_lea.sflag [#allocation6], %s415
        %s417 = sand.u32 %s65, 1
        %s418 = smul.addr %s417, 8
        %s419 = scalar_lea.vmem [#allocation5], %s418
        %p420 = pneg %p78
        %p421 = pneg %p75
        %p422 = pneg %p99
        %p423 = pneg %p96
        %p424 = pneg %p120
        %p425 = pneg %p117
        %p426 = pneg %p141
        %p427 = pneg %p138
        %p428 = pneg %p162
        %p429 = pneg %p159
        %p430 = pneg %p183
        %p431 = pneg %p180
        %p432 = pneg %p204
        %p433 = pneg %p201
        %p434 = pneg %p225
        %p435 = pneg %p222
        %p436 = pneg %p251
        %p437 = pneg %p248
        %s438 = sand.u32 %s238, 1
        %s439 = scalar_lea.sflag [#allocation4], %s438
        %s440 = sand.u32 %s238, 1
        %s441 = smul.addr %s440, 8
        %s442 = scalar_lea.vmem [#allocation13], %s441
        %v443 = vld [vmem:[%s2] sm:$0x1]
        %v444 = vld [vmem:[%s3] sm:$0x1]
        %v445 = vld [vmem:[%s378] sm:$0xff]
        %vm446 = vcmask 261120
        %v447 = vsel %vm446, %v445, 0.0
        %448 = vadd.xlane.f32.xlu0 %v447
        %v449 = vpop.xlane.xlu0 %448
        %v450 = vrcp.pop 32.0
        %v451 = vmul.f32 %v449, %v450
        %v452 = vsub.f32 %v445, %v451
        %v453 = vmul.f32 %v452, %v452
        %v454 = vsel %vm446, %v453, 0.0
        %455 = vadd.xlane.f32.xlu0 %v454
        %v456 = vpop.xlane.xlu0 %455
        %v457 = vmul.f32 %v456, %v450
        %v458 = vadd.f32 %v457, 1e-05
        %v459 = vrsqrt.pop %v458
        %v460 = vmul.f32 %v452, %v459
        %v462 = vlaneseq
        %v463 = vshrl.u32 %v462, 7
        %v464 = vsub.s32 0, %v463
        %v465 = vrot.slane %v443, %v464
        %v467 = vmul.f32 %v460, %v465
        %v469 = vlaneseq
        %v470 = vshrl.u32 %v469, 7
        %v471 = vsub.s32 0, %v470
        %v472 = vrot.slane %v444, %v471
        %v474 = vadd.f32 %v467, %v472
        %v475 = vld [vmem:[%s387] sm:$0xff]
        %v476 = vsel %vm446, %v475, 0.0
        %477 = vadd.xlane.f32.xlu0 %v476
        %v478 = vpop.xlane.xlu0 %477
        %v479 = vmul.f32 %v478, %v450
        %v480 = vsub.f32 %v475, %v479
        %v481 = vmul.f32 %v480, %v480
        %v482 = vsel %vm446, %v481, 0.0
        %483 = vadd.xlane.f32.xlu0 %v482
        %v484 = vpop.xlane.xlu0 %483
        %v485 = vmul.f32 %v484, %v450
        %v486 = vadd.f32 %v485, 1e-05
        %v487 = vrsqrt.pop %v486
        %v488 = vmul.f32 %v480, %v487
        %v489 = vmul.f32 %v488, %v465
        %v490 = vadd.f32 %v489, %v472
        %v491 = vld [vmem:[#allocation7] sm:$0xff]
        %v492 = vld [vmem:[#allocation7 + $0x8] sm:$0xff]
        %v493 = vld [vmem:[#allocation7 + $0x10] sm:$0xff]
        %v494 = vld [vmem:[#allocation7 + $0x18] sm:$0xff]
        %v496 = vsel %vm446, %v474, 0
        %498 = vmatprep.subr.mxu0 0.0
        %499 = vmatpush1.msra.mxu0 %v491
        %500 = vmatprep.subr.mxu0 0.0
        %501 = vmatpush1.msra.mxu0 %v492
        %502 = vmatprep.subr.mxu0 0.0
        %503 = vmatpush1.msra.mxu0 %v493
        %504 = vmatprep.subr.mxu0 0.0
        %505 = vmatpush1.msra.mxu0 %v494
        %506 = vmatprep.subr.mxu0 0.0
        %507 = vmatpush1.msra.mxu0 0.0
        %508 = vmatprep.subr.mxu0 0.0
        %509 = vmatpush1.msra.mxu0 0.0
        %510 = vmatprep.subr.mxu0 0.0
        %511 = vmatpush1.msra.mxu0 0.0
        %512 = vmatprep.subr.mxu0 0.0
        %513 = vmatpush1.msra.mxu0 0.0
        %514 = vmatprep.subr.mxu0 0.0
        %515 = vmatpush1.msra.mxu0 0.0
        %516 = vmatprep.subr.mxu0 0.0
        %517 = vmatpush1.msra.mxu0 0.0
        %518 = vmatprep.subr.mxu0 0.0
        %519 = vmatpush1.msra.mxu0 0.0
        %520 = vmatprep.subr.mxu0 0.0
        %521 = vmatpush1.msra.mxu0 0.0
        %522 = vmatprep.subr.mxu0 0.0
        %523 = vmatpush1.msra.mxu0 0.0
        %524 = vmatprep.subr.mxu0 0.0
        %525 = vmatpush1.msra.mxu0 0.0
        %526 = vmatprep.subr.mxu0 0.0
        %527 = vmatpush1.msra.mxu0 0.0
        %528 = vmatprep.subr.mxu0 0.0
        %529 = vmatpush1.msra.mxu0 0.0
        %530 = vmatprep.subr.mxu0 0.0
        %531 = vmatpush1.msra.mxu0 0.0
        %532 = vmatprep.subr.mxu0 0.0
        %533 = vmatpush1.msra.mxu0 0.0
        %534 = vmatprep.subr.mxu0 0.0
        %535 = vmatpush1.msra.mxu0 0.0
        %536 = vmatprep.subr.mxu0 0.0
        %537 = vmatpush1.msra.mxu0 0.0
        %538 = vmatprep.subr.mxu0 0.0
        %539 = vmatpush1.msra.mxu0 0.0
        %540 = vmatprep.subr.mxu0 0.0
        %541 = vmatpush1.msra.mxu0 0.0
        %542 = vmatprep.subr.mxu0 0.0
        %543 = vmatpush1.msra.mxu0 0.0
        %544 = vmatprep.subr.mxu0 0.0
        %545 = vmatpush1.msra.mxu0 0.0
        %546 = vmatprep.subr.mxu0 0.0
        %547 = vmatpush1.msra.mxu0 0.0
        %548 = vmatprep.subr.mxu0 0.0
        %549 = vmatpush1.msra.mxu0 0.0
        %550 = vmatprep.subr.mxu0 0.0
        %551 = vmatpush1.msra.mxu0 0.0
        %552 = vmatprep.subr.mxu0 0.0
        %553 = vmatpush1.msra.mxu0 0.0
        %554 = vmatprep.subr.mxu0 0.0
        %555 = vmatpush1.msra.mxu0 0.0
        %556 = vmatprep.subr.mxu0 0.0
        %557 = vmatpush1.msra.mxu0 0.0
        %558 = vmatprep.subr.mxu0 0.0
        %559 = vmatpush1.msra.mxu0 0.0
        %560 = vmatprep.subr.mxu0 0.0
        %561 = vmatpush1.msra.mxu0 0.0
        %562 = vmatprep.mubr.f32.mxu0 0.0
        %563 = vmatmul.mubr.f32.gmra.mrb[0].mxu0 %v496
        %v564 = vpop.f32.mrb[0].mxu0
        %v565 = vadd.f32 0.0, %v564
        %v566 = vpop.f32.mrb[0].mxu0
        %567 = vdwg.mxu0
        %v568 = vmul.f32 %v565, 0.25
        %v569 = vld [vmem:[#allocation8] sm:$0xff]
        %v570 = vld [vmem:[#allocation8 + $0x8] sm:$0xff]
        %v571 = vld [vmem:[#allocation8 + $0x10] sm:$0xff]
        %v572 = vld [vmem:[#allocation8 + $0x18] sm:$0xff]
        %v574 = vsel %vm446, %v490, 0
        %576 = vmatprep.subr.mxu0 0.0
        %577 = vmatpush1.msra.mxu0 %v569
        %578 = vmatprep.subr.mxu0 0.0
        %579 = vmatpush1.msra.mxu0 %v570
        %580 = vmatprep.subr.mxu0 0.0
        %581 = vmatpush1.msra.mxu0 %v571
        %582 = vmatprep.subr.mxu0 0.0
        %583 = vmatpush1.msra.mxu0 %v572
        %584 = vmatprep.subr.mxu0 0.0
        %585 = vmatpush1.msra.mxu0 0.0
        %586 = vmatprep.subr.mxu0 0.0
        %587 = vmatpush1.msra.mxu0 0.0
        %588 = vmatprep.subr.mxu0 0.0
        %589 = vmatpush1.msra.mxu0 0.0
        %590 = vmatprep.subr.mxu0 0.0
        %591 = vmatpush1.msra.mxu0 0.0
        %592 = vmatprep.subr.mxu0 0.0
        %593 = vmatpush1.msra.mxu0 0.0
        %594 = vmatprep.subr.mxu0 0.0
        %595 = vmatpush1.msra.mxu0 0.0
        %596 = vmatprep.subr.mxu0 0.0
        %597 = vmatpush1.msra.mxu0 0.0
        %598 = vmatprep.subr.mxu0 0.0
        %599 = vmatpush1.msra.mxu0 0.0
        %600 = vmatprep.subr.mxu0 0.0
        %601 = vmatpush1.msra.mxu0 0.0
        %602 = vmatprep.subr.mxu0 0.0
        %603 = vmatpush1.msra.mxu0 0.0
        %604 = vmatprep.subr.mxu0 0.0
        %605 = vmatpush1.msra.mxu0 0.0
        %606 = vmatprep.subr.mxu0 0.0
        %607 = vmatpush1.msra.mxu0 0.0
        %608 = vmatprep.subr.mxu0 0.0
        %609 = vmatpush1.msra.mxu0 0.0
        %610 = vmatprep.subr.mxu0 0.0
        %611 = vmatpush1.msra.mxu0 0.0
        %612 = vmatprep.subr.mxu0 0.0
        %613 = vmatpush1.msra.mxu0 0.0
        %614 = vmatprep.subr.mxu0 0.0
        %615 = vmatpush1.msra.mxu0 0.0
        %616 = vmatprep.subr.mxu0 0.0
        %617 = vmatpush1.msra.mxu0 0.0
        %618 = vmatprep.subr.mxu0 0.0
        %619 = vmatpush1.msra.mxu0 0.0
        %620 = vmatprep.subr.mxu0 0.0
        %621 = vmatpush1.msra.mxu0 0.0
        %622 = vmatprep.subr.mxu0 0.0
        %623 = vmatpush1.msra.mxu0 0.0
        %624 = vmatprep.subr.mxu0 0.0
        %625 = vmatpush1.msra.mxu0 0.0
        %626 = vmatprep.subr.mxu0 0.0
        %627 = vmatpush1.msra.mxu0 0.0
        %628 = vmatprep.subr.mxu0 0.0
        %629 = vmatpush1.msra.mxu0 0.0
        %630 = vmatprep.subr.mxu0 0.0
        %631 = vmatpush1.msra.mxu0 0.0
        %632 = vmatprep.subr.mxu0 0.0
        %633 = vmatpush1.msra.mxu0 0.0
        %634 = vmatprep.subr.mxu0 0.0
        %635 = vmatpush1.msra.mxu0 0.0
        %636 = vmatprep.subr.mxu0 0.0
        %637 = vmatpush1.msra.mxu0 0.0
        %638 = vmatprep.subr.mxu0 0.0
        %639 = vmatpush1.msra.mxu0 0.0
        %640 = vmatprep.mubr.f32.mxu0 0.0
        %641 = vmatmul.mubr.f32.gmra.mrb[0].mxu0 %v574
        %v642 = vpop.f32.mrb[0].mxu0
        %v643 = vadd.f32 0.0, %v642
        %v644 = vpop.f32.mrb[0].mxu0
        %645 = vdwg.mxu0
        %v646 = vld [vmem:[#allocation10] sm:$0xff]
        %v647 = vld [vmem:[#allocation10 + $0x8] sm:$0xff]
        %v648 = vld [vmem:[#allocation10 + $0x10] sm:$0xff]
        %v649 = vld [vmem:[#allocation10 + $0x18] sm:$0xff]
        %650 = vmatprep.subr.mxu0 0.0
        %651 = vmatpush1.msra.mxu0 %v646
        %652 = vmatprep.subr.mxu0 0.0
        %653 = vmatpush1.msra.mxu0 %v647
        %654 = vmatprep.subr.mxu0 0.0
        %655 = vmatpush1.msra.mxu0 %v648
        %656 = vmatprep.subr.mxu0 0.0
        %657 = vmatpush1.msra.mxu0 %v649
        %658 = vmatprep.subr.mxu0 0.0
        %659 = vmatpush1.msra.mxu0 0.0
        %660 = vmatprep.subr.mxu0 0.0
        %661 = vmatpush1.msra.mxu0 0.0
        %662 = vmatprep.subr.mxu0 0.0
        %663 = vmatpush1.msra.mxu0 0.0
        %664 = vmatprep.subr.mxu0 0.0
        %665 = vmatpush1.msra.mxu0 0.0
        %666 = vmatprep.subr.mxu0 0.0
        %667 = vmatpush1.msra.mxu0 0.0
        %668 = vmatprep.subr.mxu0 0.0
        %669 = vmatpush1.msra.mxu0 0.0
        %670 = vmatprep.subr.mxu0 0.0
        %671 = vmatpush1.msra.mxu0 0.0
        %672 = vmatprep.subr.mxu0 0.0
        %673 = vmatpush1.msra.mxu0 0.0
        %674 = vmatprep.subr.mxu0 0.0
        %675 = vmatpush1.msra.mxu0 0.0
        %676 = vmatprep.subr.mxu0 0.0
        %677 = vmatpush1.msra.mxu0 0.0
        %678 = vmatprep.subr.mxu0 0.0
        %679 = vmatpush1.msra.mxu0 0.0
        %680 = vmatprep.subr.mxu0 0.0
        %681 = vmatpush1.msra.mxu0 0.0
        %682 = vmatprep.subr.mxu0 0.0
        %683 = vmatpush1.msra.mxu0 0.0
        %684 = vmatprep.subr.mxu0 0.0
        %685 = vmatpush1.msra.mxu0 0.0
        %686 = vmatprep.subr.mxu0 0.0
        %687 = vmatpush1.msra.mxu0 0.0
        %688 = vmatprep.subr.mxu0 0.0
        %689 = vmatpush1.msra.mxu0 0.0
        %690 = vmatprep.subr.mxu0 0.0
        %691 = vmatpush1.msra.mxu0 0.0
        %692 = vmatprep.subr.mxu0 0.0
        %693 = vmatpush1.msra.mxu0 0.0
        %694 = vmatprep.subr.mxu0 0.0
        %695 = vmatpush1.msra.mxu0 0.0
        %696 = vmatprep.subr.mxu0 0.0
        %697 = vmatpush1.msra.mxu0 0.0
        %698 = vmatprep.subr.mxu0 0.0
        %699 = vmatpush1.msra.mxu0 0.0
        %700 = vmatprep.subr.mxu0 0.0
        %701 = vmatpush1.msra.mxu0 0.0
        %702 = vmatprep.subr.mxu0 0.0
        %703 = vmatpush1.msra.mxu0 0.0
        %704 = vmatprep.subr.mxu0 0.0
        %705 = vmatpush1.msra.mxu0 0.0
        %706 = vmatprep.subr.mxu0 0.0
        %707 = vmatpush1.msra.mxu0 0.0
        %708 = vmatprep.subr.mxu0 0.0
        %709 = vmatpush1.msra.mxu0 0.0
        %710 = vmatprep.subr.mxu0 0.0
        %711 = vmatpush1.msra.mxu0 0.0
        %712 = vmatprep.subr.mxu0 0.0
        %713 = vmatpush1.msra.mxu0 0.0
        %714 = vmatprep.mubr.f32.mxu0 0.0
        %715 = vmatmul.mubr.f32.gmra.mrb[0].mxu0 %v574
        %v716 = vpop.f32.mrb[0].mxu0
        %v717 = vadd.f32 0.0, %v716
        %v718 = vpop.f32.mrb[0].mxu0
        %719 = vdwg.mxu0
        %vm720 = vcmask 130048
        %v722 = vsel %vm720, %v568, 0
        %v725 = vsel %vm720, %v643, 0
        %727 = vmatprep.subr.mxu0 0.0
        %728 = vmatpush1.xpose.msra.mxu0 %v725
        %729 = vmatprep.subr.mxu0 0.0
        %730 = vmatpush1.xpose.msra.mxu0 0.0
        %731 = vmatprep.subr.mxu0 0.0
        %732 = vmatpush1.xpose.msra.mxu0 0.0
        %733 = vmatprep.subr.mxu0 0.0
        %734 = vmatpush1.xpose.msra.mxu0 0.0
        %735 = vmatprep.subr.mxu0 0.0
        %736 = vmatpush1.xpose.msra.mxu0 0.0
        %737 = vmatprep.subr.mxu0 0.0
        %738 = vmatpush1.xpose.msra.mxu0 0.0
        %739 = vmatprep.subr.mxu0 0.0
        %740 = vmatpush1.xpose.msra.mxu0 0.0
        %741 = vmatprep.subr.mxu0 0.0
        %742 = vmatpush1.xpose.msra.mxu0 0.0
        %743 = vmatprep.subr.mxu0 0.0
        %744 = vmatpush1.xpose.msra.mxu0 0.0
        %745 = vmatprep.subr.mxu0 0.0
        %746 = vmatpush1.xpose.msra.mxu0 0.0
        %747 = vmatprep.subr.mxu0 0.0
        %748 = vmatpush1.xpose.msra.mxu0 0.0
        %749 = vmatprep.subr.mxu0 0.0
        %750 = vmatpush1.xpose.msra.mxu0 0.0
        %751 = vmatprep.subr.mxu0 0.0
        %752 = vmatpush1.xpose.msra.mxu0 0.0
        %753 = vmatprep.subr.mxu0 0.0
        %754 = vmatpush1.xpose.msra.mxu0 0.0
        %755 = vmatprep.subr.mxu0 0.0
        %756 = vmatpush1.xpose.msra.mxu0 0.0
        %757 = vmatprep.subr.mxu0 0.0
        %758 = vmatpush1.xpose.msra.mxu0 0.0
        %759 = vmatprep.subr.mxu0 0.0
        %760 = vmatpush1.xpose.msra.mxu0 0.0
        %761 = vmatprep.subr.mxu0 0.0
        %762 = vmatpush1.xpose.msra.mxu0 0.0
        %763 = vmatprep.subr.mxu0 0.0
        %764 = vmatpush1.xpose.msra.mxu0 0.0
        %765 = vmatprep.subr.mxu0 0.0
        %766 = vmatpush1.xpose.msra.mxu0 0.0
        %767 = vmatprep.subr.mxu0 0.0
        %768 = vmatpush1.xpose.msra.mxu0 0.0
        %769 = vmatprep.subr.mxu0 0.0
        %770 = vmatpush1.xpose.msra.mxu0 0.0
        %771 = vmatprep.subr.mxu0 0.0
        %772 = vmatpush1.xpose.msra.mxu0 0.0
        %773 = vmatprep.subr.mxu0 0.0
        %774 = vmatpush1.xpose.msra.mxu0 0.0
        %775 = vmatprep.subr.mxu0 0.0
        %776 = vmatpush1.xpose.msra.mxu0 0.0
        %777 = vmatprep.subr.mxu0 0.0
        %778 = vmatpush1.xpose.msra.mxu0 0.0
        %779 = vmatprep.subr.mxu0 0.0
        %780 = vmatpush1.xpose.msra.mxu0 0.0
        %781 = vmatprep.subr.mxu0 0.0
        %782 = vmatpush1.xpose.msra.mxu0 0.0
        %783 = vmatprep.subr.mxu0 0.0
        %784 = vmatpush1.xpose.msra.mxu0 0.0
        %785 = vmatprep.subr.mxu0 0.0
        %786 = vmatpush1.xpose.msra.mxu0 0.0
        %787 = vmatprep.subr.mxu0 0.0
        %788 = vmatpush1.xpose.msra.mxu0 0.0
        %789 = vmatprep.subr.mxu0 0.0
        %790 = vmatpush1.xpose.msra.mxu0 0.0
        %791 = vmatprep.mubr.f32.mxu0 0.0
        %792 = vmatmul.mubr.f32.gmra.mrb[0].mxu0 %v722
        %v793 = vpop.f32.mrb[0].mxu0
        %v794 = vadd.f32 0.0, %v793
        %v795 = vpop.f32.mrb[0].mxu0
        %796 = vdwg.mxu0
        %vm797 = vcmask 64512
        %v798 = vsel %vm797, %v794, -inf
        %799 = vmax.xlane.f32.xlu0 %v798
        %v800 = vpop.xlane.xlu0 %799
        %v801 = vsub.f32 %v794, %v800
        %v802 = vmul.f32 %v801, 1.442695
        %v803 = vpow.pop %v802
        %v804 = vsel %vm797, %v803, 0.0
        %805 = vadd.xlane.f32.xlu0 %v804
        %v806 = vpop.xlane.xlu0 %805
        %v807 = vrcp.pop %v806
        %v808 = vmul.f32 %v803, %v807
        %v810 = vsel %vm797, %v808, 0
        %812 = vmatprep.subr.mxu0 0.0
        %813 = vmatpush1.msra.mxu0 %v717
        %814 = vmatprep.subr.mxu0 0.0
        %815 = vmatpush1.msra.mxu0 0.0
        %816 = vmatprep.subr.mxu0 0.0
        %817 = vmatpush1.msra.mxu0 0.0
        %818 = vmatprep.subr.mxu0 0.0
        %819 = vmatpush1.msra.mxu0 0.0
        %820 = vmatprep.subr.mxu0 0.0
        %821 = vmatpush1.msra.mxu0 0.0
        %822 = vmatprep.subr.mxu0 0.0
        %823 = vmatpush1.msra.mxu0 0.0
        %824 = vmatprep.subr.mxu0 0.0
        %825 = vmatpush1.msra.mxu0 0.0
        %826 = vmatprep.subr.mxu0 0.0
        %827 = vmatpush1.msra.mxu0 0.0
        %828 = vmatprep.subr.mxu0 0.0
        %829 = vmatpush1.msra.mxu0 0.0
        %830 = vmatprep.subr.mxu0 0.0
        %831 = vmatpush1.msra.mxu0 0.0
        %832 = vmatprep.subr.mxu0 0.0
        %833 = vmatpush1.msra.mxu0 0.0
        %834 = vmatprep.subr.mxu0 0.0
        %835 = vmatpush1.msra.mxu0 0.0
        %836 = vmatprep.subr.mxu0 0.0
        %837 = vmatpush1.msra.mxu0 0.0
        %838 = vmatprep.subr.mxu0 0.0
        %839 = vmatpush1.msra.mxu0 0.0
        %840 = vmatprep.subr.mxu0 0.0
        %841 = vmatpush1.msra.mxu0 0.0
        %842 = vmatprep.subr.mxu0 0.0
        %843 = vmatpush1.msra.mxu0 0.0
        %844 = vmatprep.subr.mxu0 0.0
        %845 = vmatpush1.msra.mxu0 0.0
        %846 = vmatprep.subr.mxu0 0.0
        %847 = vmatpush1.msra.mxu0 0.0
        %848 = vmatprep.subr.mxu0 0.0
        %849 = vmatpush1.msra.mxu0 0.0
        %850 = vmatprep.subr.mxu0 0.0
        %851 = vmatpush1.msra.mxu0 0.0
        %852 = vmatprep.subr.mxu0 0.0
        %853 = vmatpush1.msra.mxu0 0.0
        %854 = vmatprep.subr.mxu0 0.0
        %855 = vmatpush1.msra.mxu0 0.0
        %856 = vmatprep.subr.mxu0 0.0
        %857 = vmatpush1.msra.mxu0 0.0
        %858 = vmatprep.subr.mxu0 0.0
        %859 = vmatpush1.msra.mxu0 0.0
        %860 = vmatprep.subr.mxu0 0.0
        %861 = vmatpush1.msra.mxu0 0.0
        %862 = vmatprep.subr.mxu0 0.0
        %863 = vmatpush1.msra.mxu0 0.0
        %864 = vmatprep.subr.mxu0 0.0
        %865 = vmatpush1.msra.mxu0 0.0
        %866 = vmatprep.subr.mxu0 0.0
        %867 = vmatpush1.msra.mxu0 0.0
        %868 = vmatprep.subr.mxu0 0.0
        %869 = vmatpush1.msra.mxu0 0.0
        %870 = vmatprep.subr.mxu0 0.0
        %871 = vmatpush1.msra.mxu0 0.0
        %872 = vmatprep.subr.mxu0 0.0
        %873 = vmatpush1.msra.mxu0 0.0
        %874 = vmatprep.subr.mxu0 0.0
        %875 = vmatpush1.msra.mxu0 0.0
        %876 = vmatprep.mubr.f32.mxu0 0.0
        %877 = vmatmul.mubr.f32.gmra.mrb[0].mxu0 %v810
        %v878 = vpop.f32.mrb[0].mxu0
        %v879 = vadd.f32 0.0, %v878
        %v880 = vpop.f32.mrb[0].mxu0
        %881 = vdwg.mxu0
        %882 = vrot.lane.b32.xlu0 %v568, 112
        %v883 = vpop.permute.xlu0 %882
        %884 = vrot.lane.b32.xlu0 %v643, 112
        %v885 = vpop.permute.xlu0 %884
        %v886 = vsel %vm720, %v883, 0
        %v888 = vsel %vm720, %v885, 0
        %890 = vmatprep.subr.mxu0 0.0
        %891 = vmatpush1.xpose.msra.mxu0 %v888
        %892 = vmatprep.subr.mxu0 0.0
        %893 = vmatpush1.xpose.msra.mxu0 0.0
        %894 = vmatprep.subr.mxu0 0.0
        %895 = vmatpush1.xpose.msra.mxu0 0.0
        %896 = vmatprep.subr.mxu0 0.0
        %897 = vmatpush1.xpose.msra.mxu0 0.0
        %898 = vmatprep.subr.mxu0 0.0
        %899 = vmatpush1.xpose.msra.mxu0 0.0
        %900 = vmatprep.subr.mxu0 0.0
        %901 = vmatpush1.xpose.msra.mxu0 0.0
        %902 = vmatprep.subr.mxu0 0.0
        %903 = vmatpush1.xpose.msra.mxu0 0.0
        %904 = vmatprep.subr.mxu0 0.0
        %905 = vmatpush1.xpose.msra.mxu0 0.0
        %906 = vmatprep.subr.mxu0 0.0
        %907 = vmatpush1.xpose.msra.mxu0 0.0
        %908 = vmatprep.subr.mxu0 0.0
        %909 = vmatpush1.xpose.msra.mxu0 0.0
        %910 = vmatprep.subr.mxu0 0.0
        %911 = vmatpush1.xpose.msra.mxu0 0.0
        %912 = vmatprep.subr.mxu0 0.0
        %913 = vmatpush1.xpose.msra.mxu0 0.0
        %914 = vmatprep.subr.mxu0 0.0
        %915 = vmatpush1.xpose.msra.mxu0 0.0
        %916 = vmatprep.subr.mxu0 0.0
        %917 = vmatpush1.xpose.msra.mxu0 0.0
        %918 = vmatprep.subr.mxu0 0.0
        %919 = vmatpush1.xpose.msra.mxu0 0.0
        %920 = vmatprep.subr.mxu0 0.0
        %921 = vmatpush1.xpose.msra.mxu0 0.0
        %922 = vmatprep.subr.mxu0 0.0
        %923 = vmatpush1.xpose.msra.mxu0 0.0
        %924 = vmatprep.subr.mxu0 0.0
        %925 = vmatpush1.xpose.msra.mxu0 0.0
        %926 = vmatprep.subr.mxu0 0.0
        %927 = vmatpush1.xpose.msra.mxu0 0.0
        %928 = vmatprep.subr.mxu0 0.0
        %929 = vmatpush1.xpose.msra.mxu0 0.0
        %930 = vmatprep.subr.mxu0 0.0
        %931 = vmatpush1.xpose.msra.mxu0 0.0
        %932 = vmatprep.subr.mxu0 0.0
        %933 = vmatpush1.xpose.msra.mxu0 0.0
        %934 = vmatprep.subr.mxu0 0.0
        %935 = vmatpush1.xpose.msra.mxu0 0.0
        %936 = vmatprep.subr.mxu0 0.0
        %937 = vmatpush1.xpose.msra.mxu0 0.0
        %938 = vmatprep.subr.mxu0 0.0
        %939 = vmatpush1.xpose.msra.mxu0 0.0
        %940 = vmatprep.subr.mxu0 0.0
        %941 = vmatpush1.xpose.msra.mxu0 0.0
        %942 = vmatprep.subr.mxu0 0.0
        %943 = vmatpush1.xpose.msra.mxu0 0.0
        %944 = vmatprep.subr.mxu0 0.0
        %945 = vmatpush1.xpose.msra.mxu0 0.0
        %946 = vmatprep.subr.mxu0 0.0
        %947 = vmatpush1.xpose.msra.mxu0 0.0
        %948 = vmatprep.subr.mxu0 0.0
        %949 = vmatpush1.xpose.msra.mxu0 0.0
        %950 = vmatprep.subr.mxu0 0.0
        %951 = vmatpush1.xpose.msra.mxu0 0.0
        %952 = vmatprep.subr.mxu0 0.0
        %953 = vmatpush1.xpose.msra.mxu0 0.0
        %954 = vmatprep.mubr.f32.mxu0 0.0
        %955 = vmatmul.mubr.f32.gmra.mrb[0].mxu0 %v886
        %v956 = vpop.f32.mrb[0].mxu0
        %v957 = vadd.f32 0.0, %v956
        %v958 = vpop.f32.mrb[0].mxu0
        %959 = vdwg.mxu0
        %v960 = vsel %vm797, %v957, -inf
        %961 = vmax.xlane.f32.xlu0 %v960
        %v962 = vpop.xlane.xlu0 %961
        %v963 = vsub.f32 %v957, %v962
        %v964 = vmul.f32 %v963, 1.442695
        %v965 = vpow.pop %v964
        %v966 = vsel %vm797, %v965, 0.0
        %967 = vadd.xlane.f32.xlu0 %v966
        %v968 = vpop.xlane.xlu0 %967
        %v969 = vrcp.pop %v968
        %v970 = vmul.f32 %v965, %v969
        %972 = vrot.lane.b32.xlu0 %v717, 112
        %v973 = vpop.permute.xlu0 %972
        %v976 = vsel %vm797, %v970, 0
        %978 = vmatprep.subr.mxu0 0.0
        %979 = vmatpush1.msra.mxu0 %v973
        %980 = vmatprep.subr.mxu0 0.0
        %981 = vmatpush1.msra.mxu0 0.0
        %982 = vmatprep.subr.mxu0 0.0
        %983 = vmatpush1.msra.mxu0 0.0
        %984 = vmatprep.subr.mxu0 0.0
        %985 = vmatpush1.msra.mxu0 0.0
        %986 = vmatprep.subr.mxu0 0.0
        %987 = vmatpush1.msra.mxu0 0.0
        %988 = vmatprep.subr.mxu0 0.0
        %989 = vmatpush1.msra.mxu0 0.0
        %990 = vmatprep.subr.mxu0 0.0
        %991 = vmatpush1.msra.mxu0 0.0
        %992 = vmatprep.subr.mxu0 0.0
        %993 = vmatpush1.msra.mxu0 0.0
        %994 = vmatprep.subr.mxu0 0.0
        %995 = vmatpush1.msra.mxu0 0.0
        %996 = vmatprep.subr.mxu0 0.0
        %997 = vmatpush1.msra.mxu0 0.0
        %998 = vmatprep.subr.mxu0 0.0
        %999 = vmatpush1.msra.mxu0 0.0
        %1000 = vmatprep.subr.mxu0 0.0
        %1001 = vmatpush1.msra.mxu0 0.0
        %1002 = vmatprep.subr.mxu0 0.0
        %1003 = vmatpush1.msra.mxu0 0.0
        %1004 = vmatprep.subr.mxu0 0.0
        %1005 = vmatpush1.msra.mxu0 0.0
        %1006 = vmatprep.subr.mxu0 0.0
        %1007 = vmatpush1.msra.mxu0 0.0
        %1008 = vmatprep.subr.mxu0 0.0
        %1009 = vmatpush1.msra.mxu0 0.0
        %1010 = vmatprep.subr.mxu0 0.0
        %1011 = vmatpush1.msra.mxu0 0.0
        %1012 = vmatprep.subr.mxu0 0.0
        %1013 = vmatpush1.msra.mxu0 0.0
        %1014 = vmatprep.subr.mxu0 0.0
        %1015 = vmatpush1.msra.mxu0 0.0
        %1016 = vmatprep.subr.mxu0 0.0
        %1017 = vmatpush1.msra.mxu0 0.0
        %1018 = vmatprep.subr.mxu0 0.0
        %1019 = vmatpush1.msra.mxu0 0.0
        %1020 = vmatprep.subr.mxu0 0.0
        %1021 = vmatpush1.msra.mxu0 0.0
        %1022 = vmatprep.subr.mxu0 0.0
        %1023 = vmatpush1.msra.mxu0 0.0
        %1024 = vmatprep.subr.mxu0 0.0
        %1025 = vmatpush1.msra.mxu0 0.0
        %1026 = vmatprep.subr.mxu0 0.0
        %1027 = vmatpush1.msra.mxu0 0.0
        %1028 = vmatprep.subr.mxu0 0.0
        %1029 = vmatpush1.msra.mxu0 0.0
        %1030 = vmatprep.subr.mxu0 0.0
        %1031 = vmatpush1.msra.mxu0 0.0
        %1032 = vmatprep.subr.mxu0 0.0
        %1033 = vmatpush1.msra.mxu0 0.0
        %1034 = vmatprep.subr.mxu0 0.0
        %1035 = vmatpush1.msra.mxu0 0.0
        %1036 = vmatprep.subr.mxu0 0.0
        %1037 = vmatpush1.msra.mxu0 0.0
        %1038 = vmatprep.subr.mxu0 0.0
        %1039 = vmatpush1.msra.mxu0 0.0
        %1040 = vmatprep.subr.mxu0 0.0
        %1041 = vmatpush1.msra.mxu0 0.0
        %1042 = vmatprep.mubr.f32.mxu0 0.0
        %1043 = vmatmul.mubr.f32.gmra.mrb[0].mxu0 %v976
        %v1044 = vpop.f32.mrb[0].mxu0
        %v1045 = vadd.f32 0.0, %v1044
        %v1046 = vpop.f32.mrb[0].mxu0
        %1047 = vdwg.mxu0
        %1049 = vrot.lane.b32.xlu0 %v1045, 16
        %v1050 = vpop.permute.xlu0 %1049
        %v1052 = vsel %vm720, %v879, %v1050
        %v1053 = vld [vmem:[#allocation11] sm:$0xff]
        %v1054 = vld [vmem:[#allocation11 + $0x8] sm:$0xff]
        %v1055 = vld [vmem:[#allocation11 + $0x10] sm:$0xff]
        %v1056 = vld [vmem:[#allocation11 + $0x18] sm:$0xff]
        %v1057 = vld [vmem:[%s8] sm:$0x1]
        %v1059 = vlaneseq
        %v1060 = vshrl.u32 %v1059, 7
        %v1061 = vsub.s32 0, %v1060
        %v1062 = vrot.slane %v1057, %v1061
        %v1065 = vsel %vm446, %v1052, 0
        %1067 = vmatprep.subr.mxu0 0.0
        %1068 = vmatpush1.msra.mxu0 %v1053
        %1069 = vmatprep.subr.mxu0 0.0
        %1070 = vmatpush1.msra.mxu0 %v1054
        %1071 = vmatprep.subr.mxu0 0.0
        %1072 = vmatpush1.msra.mxu0 %v1055
        %1073 = vmatprep.subr.mxu0 0.0
        %1074 = vmatpush1.msra.mxu0 %v1056
        %1075 = vmatprep.subr.mxu0 0.0
        %1076 = vmatpush1.msra.mxu0 0.0
        %1077 = vmatprep.subr.mxu0 0.0
        %1078 = vmatpush1.msra.mxu0 0.0
        %1079 = vmatprep.subr.mxu0 0.0
        %1080 = vmatpush1.msra.mxu0 0.0
        %1081 = vmatprep.subr.mxu0 0.0
        %1082 = vmatpush1.msra.mxu0 0.0
        %1083 = vmatprep.subr.mxu0 0.0
        %1084 = vmatpush1.msra.mxu0 0.0
        %1085 = vmatprep.subr.mxu0 0.0
        %1086 = vmatpush1.msra.mxu0 0.0
        %1087 = vmatprep.subr.mxu0 0.0
        %1088 = vmatpush1.msra.mxu0 0.0
        %1089 = vmatprep.subr.mxu0 0.0
        %1090 = vmatpush1.msra.mxu0 0.0
        %1091 = vmatprep.subr.mxu0 0.0
        %1092 = vmatpush1.msra.mxu0 0.0
        %1093 = vmatprep.subr.mxu0 0.0
        %1094 = vmatpush1.msra.mxu0 0.0
        %1095 = vmatprep.subr.mxu0 0.0
        %1096 = vmatpush1.msra.mxu0 0.0
        %1097 = vmatprep.subr.mxu0 0.0
        %1098 = vmatpush1.msra.mxu0 0.0
        %1099 = vmatprep.subr.mxu0 0.0
        %1100 = vmatpush1.msra.mxu0 0.0
        %1101 = vmatprep.subr.mxu0 0.0
        %1102 = vmatpush1.msra.mxu0 0.0
        %1103 = vmatprep.subr.mxu0 0.0
        %1104 = vmatpush1.msra.mxu0 0.0
        %1105 = vmatprep.subr.mxu0 0.0
        %1106 = vmatpush1.msra.mxu0 0.0
        %1107 = vmatprep.subr.mxu0 0.0
        %1108 = vmatpush1.msra.mxu0 0.0
        %1109 = vmatprep.subr.mxu0 0.0
        %1110 = vmatpush1.msra.mxu0 0.0
        %1111 = vmatprep.subr.mxu0 0.0
        %1112 = vmatpush1.msra.mxu0 0.0
        %1113 = vmatprep.subr.mxu0 0.0
        %1114 = vmatpush1.msra.mxu0 0.0
        %1115 = vmatprep.subr.mxu0 0.0
        %1116 = vmatpush1.msra.mxu0 0.0
        %1117 = vmatprep.subr.mxu0 0.0
        %1118 = vmatpush1.msra.mxu0 0.0
        %1119 = vmatprep.subr.mxu0 0.0
        %1120 = vmatpush1.msra.mxu0 0.0
        %1121 = vmatprep.subr.mxu0 0.0
        %1122 = vmatpush1.msra.mxu0 0.0
        %1123 = vmatprep.subr.mxu0 0.0
        %1124 = vmatpush1.msra.mxu0 0.0
        %1125 = vmatprep.subr.mxu0 0.0
        %1126 = vmatpush1.msra.mxu0 0.0
        %1127 = vmatprep.subr.mxu0 0.0
        %1128 = vmatpush1.msra.mxu0 0.0
        %1129 = vmatprep.subr.mxu0 0.0
        %1130 = vmatpush1.msra.mxu0 0.0
        %1131 = vmatprep.mubr.f32.mxu0 0.0
        %1132 = vmatmul.mubr.f32.gmra.mrb[0].mxu0 %v1065
        %v1133 = vpop.f32.mrb[0].mxu0
        %v1134 = vadd.f32 %v1062, %v1133
        %v1135 = vpop.f32.mrb[0].mxu0
        %1136 = vdwg.mxu0
        %1137 = vst.msk [vmem:[%s442] sm:$0xff] %vm446, %v1134
        %s1138 = sand.u32 %s238, 1
        %s1139 = scalar_lea.sflag [#allocation4], %s1138
        %s1140 = sand.u32 %s238, 1
        %s1141 = smul.addr %s1140, 8
        %s1142 = scalar_lea.vmem [#allocation13], %s1141
        // Predicated region
        $region81: #{tpu_custom_call.1} parent=55 // pred_check
          %p1143 = pneg %p248
        $region82: #{tpu_custom_call.1} parent=55 // pred_check_branch
          %1145 = sbr.rel (%p1143) target = $region84
        $region83: #{tpu_custom_call.1} parent=55 // pred_region
          %s1147 = ssub.s32 128, 128
          %1148 = vsyncadd %s1139, %s1147
          %s1149 = smul.addr %s31, 128
          %s1150 = scalar_lea.hbm %s9, %s1149
          %s1152 = sshll.u32 %s1142, 4
          %s1153 = int_to_ptr.vmem [resolvable:$true] %s1152
          %1155 = dma.vmem_to_hbm [thread:$0]  %s1153, 128, %s1150, %s1139
        $region84: #{tpu_custom_call.1} parent=55 // pred_fallthru
          _
      $region56: #{tpu_custom_call.1} parent=5 // pred_fallthru
        _
      %p1156 = scmp.le.s32.totalorder 2, %s26
      // Predicated region
      $region85: #{tpu_custom_call.1} parent=5 // pred_check
        %p1157 = pneg %p1156
      $region86: #{tpu_custom_call.1} parent=5 // pred_check_branch
        %1159 = sbr.rel (%p1157) target = $region88
      $region87: #{tpu_custom_call.1} parent=5 // pred_region
        %s1160 = ssub.s32 %s26, 2
        // Predicated region
        $region89: #{tpu_custom_call.1} parent=87 // pred_check
          %p1161 = pneg %p254
        $region90: #{tpu_custom_call.1} parent=87 // pred_check_branch
          %1163 = sbr.rel (%p1161) target = $region92
        $region91: #{tpu_custom_call.1} parent=87 // pred_region
          %s1164 = sand.u32 %s239, 1
          %s1165 = scalar_lea.sflag [#allocation4], %s1164
          %s1166 = sand.u32 %s239, 1
          %s1167 = smul.addr %s1166, 8
          %s1168 = scalar_lea.vmem [#allocation13], %s1167
          %1169 = dma.done %s1165, 128
        $region92: #{tpu_custom_call.1} parent=87 // pred_fallthru
          _
      $region88: #{tpu_custom_call.1} parent=5 // pred_fallthru
        _
    $region6: #{tpu_custom_call.1} parent=1 // loop_footer
      %s30 = sadd.s32 1, %s26
    $region7: #{tpu_custom_call.1} parent=1 // loop_footer_branch
      %25 = sbr.rel target = $region3
    $region8: #{tpu_custom_call.1} parent=1 // loop_exit
      _
    %1170 = vsyncpa [#allocation3], 1
    %s1171 = scalar_lea.sflag [#allocation3], 1
    %1172 = vsyncpa %s1171, 1
    %1173 = vsyncpa [#allocation6], 1
    %s1174 = scalar_lea.sflag [#allocation6], 1
    %1175 = vsyncpa %s1174, 1
    %1176 = vsyncpa [#allocation9], 1
    %1177 = vsyncpa [#allocation12], 1
    %1178 = vsyncpa [#allocation4], 1
    %s1179 = scalar_lea.sflag [#allocation4], 1
    %1180 = vsyncpa %s1179, 1

</llo_original>
